<compile_context>
chip_gen: v6e
topology: v6e:2x2x1
jax: 0.10.0
libtpu: 0.0.40
codegen_flags: <defaults>
</compile_context>

<pallas_src>
import jax
import jax.numpy as jnp
from jax import lax
from jax.experimental import pallas as pl
from jax.experimental.pallas import tpu as pltpu

SELU_ALPHA = 1.6732632423543772
SELU_SCALE = 1.0507009873554805
GN_EPS = 1e-5


def _selu(x):
    return SELU_SCALE * jnp.where(x > 0, x, SELU_ALPHA * (jnp.exp(x) - 1.0))


def _fullsum(a):  # 2-D -> (1, 1)
    return jnp.sum(jnp.sum(a, axis=-1, keepdims=True), axis=0, keepdims=True)


def net_kernel(x_ref, adj_ref, mask_ref,
               gnw_ref, gnb_ref, gnm_ref,
               w1_ref, b1_ref, wmt_ref, bmt_ref,
               logp_ref, st_ref, scal_ref):
    G, N, F = x_ref.shape
    H = b1_ref.shape[1]
    K = bmt_ref.shape[0]

    x = x_ref[...]                                     # (G, N, F) f32, padded rows == 0
    mask = mask_ref[...]                               # (G, 1, N) f32 lane-major node mask

    n_valid = jnp.sum(mask, axis=-1, keepdims=True)    # (G, 1, 1)
    nv = jnp.maximum(n_valid, 1.0)                     # guard padded / empty graph slots

    # ---------------- GraphNorm (masked stats via batched (1,N)x(N,F) MXU matmuls) ---
    gnw = gnw_ref[...].reshape(1, 1, F)
    gnb = gnb_ref[...].reshape(1, 1, F)
    gnm = gnm_ref[...].reshape(1, 1, F)
    dnum = (((2,), (1,)), ((0,), (0,)))                # contract node axis, batch over G
    xsum = lax.dot_general(mask, x, dnum, preferred_element_type=jnp.float32)      # (G,1,F)
    mean = xsum / nv
    shift = mean * gnm                                 # (G, 1, F)
    ctr = x - shift                                    # (G, N, F)
    sq = lax.dot_general(mask, ctr * ctr, dnum, preferred_element_type=jnp.float32)  # (G,1,F)
    var = sq / nv
    xn = gnw * ctr * lax.rsqrt(var + GN_EPS) + gnb     # (G, N, F); padded rows harmless

    # ---------------- GCN lift: one batched (G*N, F) @ (F, H) bf16 matmul, f32 acc ---
    y = jnp.dot(xn.reshape(G * N, F).astype(jnp.bfloat16), w1_ref[...],
                preferred_element_type=jnp.float32)    # (G*N, H) f32

    ones_n1 = jnp.ones((N, 1), jnp.bfloat16)           # hoisted out of the graph loop
    b1 = b1_ref[...]                                   # (1, H)
    wmt = wmt_ref[...]                                 # (K, H) bf16
    bmt = bmt_ref[...]                                 # (K, 1)
    inv_sqrt_k = 1.0 / (float(K) ** 0.5)

    for g in range(G):                                 # static unroll: per-graph adjacency work
        adj_g = adj_ref[g]                             # (N, N) bf16, adj[src, dst]
        mask_g = mask[g]                               # (1, N)
        y_g = y[g * N:(g + 1) * N, :]                  # (N, H)

        # --- GCNConv: D^-1/2 (A^T + I) D^-1/2 (XW) + b, SELU
        indeg = lax.dot_general(adj_g, ones_n1, (((0,), (0,)), ((), ())),
                                preferred_element_type=jnp.float32) + 1.0   # (N,1) in-deg + self-loop
        dinv = lax.rsqrt(indeg)                                              # (N, 1)
        u = y_g * dinv                                                       # (N, H)
        z = lax.dot_general(adj_g, u.astype(jnp.bfloat16), (((0,), (0,)), ((), ())),
                            preferred_element_type=jnp.float32) + u          # A^T u + u
        h = _selu(z * dinv + b1)                                             # (N, H)
        h_bf = h.astype(jnp.bfloat16)

        # --- DMoN assignments, built directly in lane-dense (K, N) layout
        logits_t = lax.dot_general(wmt, h_bf, (((1,), (1,)), ((), ())),
                                   preferred_element_type=jnp.float32) + bmt  # (K, N)
        lmax = jnp.max(logits_t, axis=0, keepdims=True)
        ex = jnp.exp(logits_t - lmax)
        s_t = ex / jnp.sum(ex, axis=0, keepdims=True)
        s_t = s_t * mask_g                                                   # masked S^T
        s_t_bf = s_t.astype(jnp.bfloat16)

        pooled = _selu(lax.dot_general(s_t_bf, h_bf, (((1,), (0,)), ((), ())),
                                       preferred_element_type=jnp.float32))   # (K, H)

        # --- spectral loss: only the trace (out_adj never materialized)
        ta = lax.dot_general(s_t_bf, adj_g, (((1,), (0,)), ((), ())),
                             preferred_element_type=jnp.float32)              # (K, N) = S^T A
        trace_sas = _fullsum(ta * s_t)                                        # tr(S^T A S)
        cb = jnp.sum(ta, axis=-1, keepdims=True)                              # (K, 1) = S^T d
        m2 = _fullsum(indeg) - float(N)                                       # sum(adj) == 2m (exact)
        m2s = jnp.maximum(m2, 1e-12)                                          # guard edgeless graphs
        spectral = -(trace_sas - _fullsum(cb * cb) / m2s) / m2s               # (1, 1)

        # --- orthogonality loss: ||SS/||SS||_F - I/sqrt(K)||_F via trace identity
        ss = lax.dot_general(s_t_bf, s_t_bf, (((1,), (1,)), ((), ())),
                             preferred_element_type=jnp.float32)              # (K, K)
        ss_fro = jnp.maximum(jnp.sqrt(_fullsum(ss * ss)), 1e-12)
        tr_ss = _fullsum(s_t * s_t)                                           # tr(S^T S)
        ortho = jnp.sqrt(jnp.maximum(2.0 - 2.0 * tr_ss * inv_sqrt_k / ss_fro, 0.0))

        # --- cluster-size norm (combined with n_valid in the wrapper)
        csize = jnp.sum(s_t, axis=-1, keepdims=True)                          # (K, 1)
        cnorm = jnp.sqrt(_fullsum(csize * csize))

        # --- log_softmax over pooled features
        omax = jnp.max(pooled, axis=-1, keepdims=True)
        sh = pooled - omax
        lse = jnp.log(jnp.sum(jnp.exp(sh), axis=-1, keepdims=True))

        logp_ref[g] = sh - lse                                                # (K, H)
        st_ref[g] = s_t                                                       # (K, N) lane-dense
        scal_ref[g] = jnp.concatenate(
            [spectral, ortho, cnorm, n_valid[g]], axis=-1)                    # one packed (1,4) store


def net_forward(x, edge_index, batch, params, num_graphs, n_max, graphs_per_step=8):
    """x: [N_tot, F], edge_index: [2, E], batch: [N_tot] (sorted graph ids)."""
    n_tot, f = x.shape
    h = params["w1"].shape[1]
    k = params["wm"].shape[1]
    b = num_graphs

    n_pad = ((n_max + 15) // 16) * 16                  # keep bf16/f32 reshapes layout-preserving
    g = max(1, min(graphs_per_step, b))
    b_pad = ((b + g - 1) // g) * g

    # ---- glue: to_dense_batch / to_dense_adj (data-dependent scatter, stays in XLA) ----
    # TODO(synk): for large E / n_max, build adjacency tiles inside the kernel from
    # scalar-prefetched edge lists instead of materializing B*N^2 dense adj in HBM.
    counts = jnp.bincount(batch, length=b)
    ptr = jnp.concatenate([jnp.zeros((1,), jnp.int32), jnp.cumsum(counts).astype(jnp.int32)])
    pos = jnp.arange(n_tot, dtype=jnp.int32) - ptr[batch]
    x_dense = jnp.zeros((b_pad, n_pad, f), jnp.float32).at[batch, pos].set(x)
    mask = jnp.zeros((b_pad, 1, n_pad), jnp.float32).at[batch, 0, pos].set(1.0)
    src, dst = edge_index[0], edge_index[1]
    adj = (jnp.zeros((b_pad, n_pad, n_pad), jnp.float32)
           .at[batch[src], pos[src], pos[dst]].add(1.0)).astype(jnp.bfloat16)

    w1_bf = params["w1"].astype(jnp.bfloat16)                   # (F, H)
    wmt_bf = jnp.transpose(params["wm"]).astype(jnp.bfloat16)   # (K, H)
    bmt = jnp.transpose(params["bm"])                           # (K, 1)

    in_specs = [
        pl.BlockSpec((g, n_pad, f), lambda i: (i, 0, 0)),
        pl.BlockSpec((g, n_pad, n_pad), lambda i: (i, 0, 0)),
        pl.BlockSpec((g, 1, n_pad), lambda i: (i, 0, 0)),
        pl.BlockSpec((1, f), lambda i: (0, 0)),
        pl.BlockSpec((1, f), lambda i: (0, 0)),
        pl.BlockSpec((1, f), lambda i: (0, 0)),
        pl.BlockSpec((f, h), lambda i: (0, 0)),
        pl.BlockSpec((1, h), lambda i: (0, 0)),
        pl.BlockSpec((k, h), lambda i: (0, 0)),
        pl.BlockSpec((k, 1), lambda i: (0, 0)),
    ]
    out_specs = [
        pl.BlockSpec((g, k, h), lambda i: (i, 0, 0)),
        pl.BlockSpec((g, k, n_pad), lambda i: (i, 0, 0)),
        pl.BlockSpec((g, 1, 4), lambda i: (i, 0, 0)),
    ]
    out_shape = (
        jax.ShapeDtypeStruct((b_pad, k, h), jnp.float32),
        jax.ShapeDtypeStruct((b_pad, k, n_pad), jnp.float32),
        jax.ShapeDtypeStruct((b_pad, 1, 4), jnp.float32),
    )

    # Explicit scoped-VMEM budget (blocks are double-buffered); clamp so it stays
    # valid on v5e/v6e (128 MiB physical) and v7x (64 MiB physical).
    blk_in = 4 * g * n_pad * f + 2 * g * n_pad * n_pad + 4 * g * n_pad \
        + 12 * f + 2 * f * h + 4 * h + 2 * k * h + 4 * k
    blk_out = 4 * g * (k * h + k * n_pad + 4)
    work = 4 * g * n_pad * (2 * f + 4 * h) + 2 * g * n_pad * n_pad
    vmem_limit = int(min(48 * (1 << 20),
                         max(32 * (1 << 20), 2 * (blk_in + blk_out) + work + (2 << 20))))

    logp, s_t, scal = pl.pallas_call(
        net_kernel,
        out_shape=out_shape,
        grid_spec=pltpu.PrefetchScalarGridSpec(
            num_scalar_prefetch=0,
            grid=(b_pad // g,),
            in_specs=in_specs,
            out_specs=out_specs),
        compiler_params=pltpu.CompilerParams(
            dimension_semantics=("parallel",),
            vmem_limit_bytes=vmem_limit),
    )(x_dense, adj, mask,
      params["gn_w"], params["gn_b"], params["gn_ms"],
      w1_bf, params["b1"], wmt_bf, bmt)

    logp = logp[:b]
    s = jnp.swapaxes(s_t[:b], 1, 2)[:, :n_max, :]      # back to (B, N_max, K)
    scal = scal[:b]

    # ---- combine per-graph loss scalars exactly like DMoNPooling ----
    spectral_loss = jnp.mean(scal[:, 0, 0])
    ortho_loss = jnp.mean(scal[:, 0, 1])
    cl_norm = scal[:, 0, 2]     # ||cluster_size_b||_2
    msum = scal[:, 0, 3]        # mask.sum(dim=1) per graph
    norm_i = jnp.sqrt(jnp.float32(k))
    # reproduces the PyG (B,) / (B,1) broadcast to (B,B) before .mean()
    cluster_loss = jnp.mean(cl_norm[None, :] / msum[:, None] * norm_i - 1.0)
    total_loss = spectral_loss + ortho_loss + cluster_loss
    return logp, total_loss, s


def make_params(key, f, h, k):
    ks = jax.random.split(key, 7)
    return {
        "gn_w": jax.random.normal(ks[0], (1, f), jnp.float32) * 0.1 + 1.0,
        "gn_b": jax.random.normal(ks[1], (1, f), jnp.float32) * 0.1,
        "gn_ms": jax.random.normal(ks[2], (1, f), jnp.float32) * 0.1 + 1.0,
        "w1": jax.random.normal(ks[3], (f, h), jnp.float32) * (1.0 / (f ** 0.5)),
        "b1": jax.random.normal(ks[4], (1, h), jnp.float32) * 0.1,
        "wm": jax.random.normal(ks[5], (h, k), jnp.float32) * (1.0 / (h ** 0.5)),
        "bm": jax.random.normal(ks[6], (1, k), jnp.float32) * 0.1,
    }


if __name__ == "__main__":
    F_IN, HIDDEN, K_OUT = 16, 128, 8          # in_channels, hidden_channels (default), out_channels
    nodes_per_graph = [12, 16]
    B = len(nodes_per_graph)
    N_MAX = max(nodes_per_graph)
    N_TOT = sum(nodes_per_graph)

    key = jax.random.PRNGKey(0)
    kx, kp = jax.random.split(key)
    x_flat = jax.random.normal(kx, (N_TOT, F_IN), dtype=jnp.float32)

    # symmetric ring graph per batch element (PyG-style flat inputs)
    batch_list, src_list, dst_list = [], [], []
    off = 0
    for gi, n in enumerate(nodes_per_graph):
        batch_list += [gi] * n
        for i in range(n):
            a, c = off + i, off + (i + 1) % n
            src_list += [a, c]
            dst_list += [c, a]
        off += n
    batch = jnp.array(batch_list, dtype=jnp.int32)
    edge_index = jnp.array([src_list, dst_list], dtype=jnp.int32)

    params = make_params(kp, F_IN, HIDDEN, K_OUT)

    log_probs, loss, s = net_forward(x_flat, edge_index, batch, params, B, N_MAX)
    jax.block_until_ready((log_probs, loss, s))
    assert log_probs.shape == (B, K_OUT, HIDDEN)
    assert s.shape == (B, N_MAX, K_OUT)
    assert loss.shape == ()
    print("KERNEL_OK")
</pallas_src>

<mosaic_0001>
module attributes {stable_mosaic.version = 11 : i64} {
  func.func @net_kernel(%arg0: i32, %arg1: memref<2x16x16xf32, #tpu.memory_space<vmem>>, %arg2: memref<2x16x16xbf16, #tpu.memory_space<vmem>>, %arg3: memref<2x1x16xf32, #tpu.memory_space<vmem>>, %arg4: memref<1x16xf32, #tpu.memory_space<vmem>>, %arg5: memref<1x16xf32, #tpu.memory_space<vmem>>, %arg6: memref<1x16xf32, #tpu.memory_space<vmem>>, %arg7: memref<16x128xbf16, #tpu.memory_space<vmem>>, %arg8: memref<1x128xf32, #tpu.memory_space<vmem>>, %arg9: memref<8x128xbf16, #tpu.memory_space<vmem>>, %arg10: memref<8x1xf32, #tpu.memory_space<vmem>>, %arg11: memref<2x8x128xf32, #tpu.memory_space<vmem>>, %arg12: memref<2x8x16xf32, #tpu.memory_space<vmem>>, %arg13: memref<2x1x4xf32, #tpu.memory_space<vmem>>) attributes {dimension_semantics = [#tpu.dimension_semantics<parallel>], iteration_bounds = array<i64: 1>, scalar_prefetch = 0 : i64, scratch_operands = 0 : i64, tpu.core_type = #tpu.core_type<tc>, window_params = [{transform_indices = @transform_0, window_bounds = array<i64: 2, 16, 16>}, {transform_indices = @transform_1, window_bounds = array<i64: 2, 16, 16>}, {transform_indices = @transform_2, window_bounds = array<i64: 2, 1, 16>}, {pipeline_mode = #tpu.pipeline_mode<synchronous>, transform_indices = @transform_3, window_bounds = array<i64: 1, 16>}, {pipeline_mode = #tpu.pipeline_mode<synchronous>, transform_indices = @transform_4, window_bounds = array<i64: 1, 16>}, {pipeline_mode = #tpu.pipeline_mode<synchronous>, transform_indices = @transform_5, window_bounds = array<i64: 1, 16>}, {pipeline_mode = #tpu.pipeline_mode<synchronous>, transform_indices = @transform_6, window_bounds = array<i64: 16, 128>}, {pipeline_mode = #tpu.pipeline_mode<synchronous>, transform_indices = @transform_7, window_bounds = array<i64: 1, 128>}, {pipeline_mode = #tpu.pipeline_mode<synchronous>, transform_indices = @transform_8, window_bounds = array<i64: 8, 128>}, {pipeline_mode = #tpu.pipeline_mode<synchronous>, transform_indices = @transform_9, window_bounds = array<i64: 8, 1>}, {transform_indices = @transform_10, window_bounds = array<i64: 2, 8, 128>}, {transform_indices = @transform_11, window_bounds = array<i64: 2, 8, 16>}, {transform_indices = @transform_12, window_bounds = array<i64: 2, 1, 4>}]} {
    %c0 = arith.constant 0 : index
    %c0_0 = arith.constant 0 : index
    %c0_1 = arith.constant 0 : index
    %0 = vector.load %arg1[%c0, %c0_0, %c0_1] : memref<2x16x16xf32, #tpu.memory_space<vmem>>, vector<2x16x16xf32>
    %c0_2 = arith.constant 0 : index
    %c0_3 = arith.constant 0 : index
    %c0_4 = arith.constant 0 : index
    %1 = vector.load %arg3[%c0_2, %c0_3, %c0_4] : memref<2x1x16xf32, #tpu.memory_space<vmem>>, vector<2x1x16xf32>
    %cst = arith.constant dense<0.000000e+00> : vector<2x1xf32>
    %2 = vector.multi_reduction <add>, %1, %cst [2] : vector<2x1x16xf32> to vector<2x1xf32>
    %3 = vector.shape_cast %2 : vector<2x1xf32> to vector<2x1x1xf32>
    %cst_5 = arith.constant 1.000000e+00 : f32
    %4 = vector.broadcast %cst_5 : f32 to vector<2x1x1xf32>
    %5 = arith.maximumf %3, %4 : vector<2x1x1xf32>
    %c0_6 = arith.constant 0 : index
    %c0_7 = arith.constant 0 : index
    %6 = vector.load %arg4[%c0_6, %c0_7] : memref<1x16xf32, #tpu.memory_space<vmem>>, vector<1x16xf32>
    %7 = vector.shape_cast %6 : vector<1x16xf32> to vector<1x1x16xf32>
    %c0_8 = arith.constant 0 : index
    %c0_9 = arith.constant 0 : index
    %8 = vector.load %arg5[%c0_8, %c0_9] : memref<1x16xf32, #tpu.memory_space<vmem>>, vector<1x16xf32>
    %9 = vector.shape_cast %8 : vector<1x16xf32> to vector<1x1x16xf32>
    %c0_10 = arith.constant 0 : index
    %c0_11 = arith.constant 0 : index
    %10 = vector.load %arg6[%c0_10, %c0_11] : memref<1x16xf32, #tpu.memory_space<vmem>>, vector<1x16xf32>
    %11 = vector.shape_cast %10 : vector<1x16xf32> to vector<1x1x16xf32>
    %cst_12 = arith.constant dense<0.000000e+00> : vector<2x1x16xf32>
    %12 = tpu.matmul %1, %0, %cst_12 {dimension_numbers = #tpu.dot_dimension_numbers<[2], [1], [1], [2], [0, 0, 0, 1, 1, 2], [0], [0]>} : vector<2x1x16xf32>, vector<2x16x16xf32>, vector<2x1x16xf32> -> vector<2x1x16xf32>
    %13 = vector.broadcast %5 : vector<2x1x1xf32> to vector<2x1x16xf32>
    %14 = arith.divf %12, %13 : vector<2x1x16xf32>
    %15 = vector.broadcast %11 : vector<1x1x16xf32> to vector<2x1x16xf32>
    %16 = arith.mulf %14, %15 : vector<2x1x16xf32>
    %17 = vector.broadcast %16 : vector<2x1x16xf32> to vector<2x16x16xf32>
    %18 = arith.subf %0, %17 : vector<2x16x16xf32>
    %19 = arith.mulf %18, %18 : vector<2x16x16xf32>
    %cst_13 = arith.constant dense<0.000000e+00> : vector<2x1x16xf32>
    %20 = tpu.matmul %1, %19, %cst_13 {dimension_numbers = #tpu.dot_dimension_numbers<[2], [1], [1], [2], [0, 0, 0, 1, 1, 2], [0], [0]>} : vector<2x1x16xf32>, vector<2x16x16xf32>, vector<2x1x16xf32> -> vector<2x1x16xf32>
    %21 = vector.broadcast %5 : vector<2x1x1xf32> to vector<2x1x16xf32>
    %22 = arith.divf %20, %21 : vector<2x1x16xf32>
    %23 = vector.broadcast %7 : vector<1x1x16xf32> to vector<2x16x16xf32>
    %24 = arith.mulf %23, %18 : vector<2x16x16xf32>
    %cst_14 = arith.constant 9.99999974E-6 : f32
    %25 = vector.broadcast %cst_14 : f32 to vector<2x1x16xf32>
    %26 = arith.addf %22, %25 : vector<2x1x16xf32>
    %27 = math.rsqrt %26 : vector<2x1x16xf32>
    %28 = vector.broadcast %27 : vector<2x1x16xf32> to vector<2x16x16xf32>
    %29 = arith.mulf %24, %28 : vector<2x16x16xf32>
    %30 = vector.broadcast %9 : vector<1x1x16xf32> to vector<2x16x16xf32>
    %31 = arith.addf %29, %30 : vector<2x16x16xf32>
    %32 = vector.shape_cast %31 : vector<2x16x16xf32> to vector<32x16xf32>
    %33 = arith.truncf %32 : vector<32x16xf32> to vector<32x16xbf16>
    %c0_15 = arith.constant 0 : index
    %c0_16 = arith.constant 0 : index
    %34 = vector.load %arg7[%c0_15, %c0_16] : memref<16x128xbf16, #tpu.memory_space<vmem>>, vector<16x128xbf16>
    %cst_17 = arith.constant dense<0.000000e+00> : vector<32x128xf32>
    %35 = tpu.matmul %33, %34, %cst_17 {dimension_numbers = #tpu.dot_dimension_numbers<[1], [0], [0], [1], [0, 0, 1, 1], [], []>} : vector<32x16xbf16>, vector<16x128xbf16>, vector<32x128xf32> -> vector<32x128xf32>
    %cst_18 = arith.constant 1.000000e+00 : bf16
    %36 = vector.broadcast %cst_18 : bf16 to vector<16x1xbf16>
    %c0_19 = arith.constant 0 : index
    %c0_20 = arith.constant 0 : index
    %37 = vector.load %arg8[%c0_19, %c0_20] : memref<1x128xf32, #tpu.memory_space<vmem>>, vector<1x128xf32>
    %c0_21 = arith.constant 0 : index
    %c0_22 = arith.constant 0 : index
    %38 = vector.load %arg9[%c0_21, %c0_22] : memref<8x128xbf16, #tpu.memory_space<vmem>>, vector<8x128xbf16>
    %c0_23 = arith.constant 0 : index
    %c0_24 = arith.constant 0 : index
    %39 = vector.load %arg10[%c0_23, %c0_24] : memref<8x1xf32, #tpu.memory_space<vmem>>, vector<8x1xf32>
    %c0_25 = arith.constant 0 : index
    %c0_26 = arith.constant 0 : index
    %c0_27 = arith.constant 0 : index
    %40 = vector.load %arg2[%c0_25, %c0_26, %c0_27] : memref<2x16x16xbf16, #tpu.memory_space<vmem>>, vector<1x16x16xbf16>
    %41 = vector.shape_cast %40 : vector<1x16x16xbf16> to vector<16x16xbf16>
    %42 = vector.extract_strided_slice %1 {offsets = [0, 0, 0], sizes = [1, 1, 16], strides = [1, 1, 1]} : vector<2x1x16xf32> to vector<1x1x16xf32>
    %43 = vector.shape_cast %42 : vector<1x1x16xf32> to vector<1x16xf32>
    %44 = vector.extract_strided_slice %35 {offsets = [0, 0], sizes = [16, 128], strides = [1, 1]} : vector<32x128xf32> to vector<16x128xf32>
    %cst_28 = arith.constant dense<0.000000e+00> : vector<16x1xf32>
    %45 = tpu.matmul %41, %36, %cst_28 {dimension_numbers = #tpu.dot_dimension_numbers<[0], [0], [1], [1], [0, 1, 1, 1], [], []>} : vector<16x16xbf16>, vector<16x1xbf16>, vector<16x1xf32> -> vector<16x1xf32>
    %cst_29 = arith.constant 1.000000e+00 : f32
    %46 = vector.broadcast %cst_29 : f32 to vector<16x1xf32>
    %47 = arith.addf %45, %46 : vector<16x1xf32>
    %48 = math.rsqrt %47 : vector<16x1xf32>
    %49 = vector.broadcast %48 : vector<16x1xf32> to vector<16x128xf32>
    %50 = arith.mulf %44, %49 : vector<16x128xf32>
    %51 = arith.truncf %50 : vector<16x128xf32> to vector<16x128xbf16>
    %cst_30 = arith.constant dense<0.000000e+00> : vector<16x128xf32>
    %52 = tpu.matmul %41, %51, %cst_30 {dimension_numbers = #tpu.dot_dimension_numbers<[0], [0], [1], [1], [0, 1, 1, 1], [], []>} : vector<16x16xbf16>, vector<16x128xbf16>, vector<16x128xf32> -> vector<16x128xf32>
    %53 = arith.addf %52, %50 : vector<16x128xf32>
    %54 = vector.broadcast %48 : vector<16x1xf32> to vector<16x128xf32>
    %55 = arith.mulf %53, %54 : vector<16x128xf32>
    %56 = vector.broadcast %37 : vector<1x128xf32> to vector<16x128xf32>
    %57 = arith.addf %55, %56 : vector<16x128xf32>
    %cst_31 = arith.constant 0.000000e+00 : f32
    %58 = vector.broadcast %cst_31 : f32 to vector<16x128xf32>
    %59 = arith.cmpf ogt, %57, %58 : vector<16x128xf32>
    %60 = math.exp %57 : vector<16x128xf32>
    %cst_32 = arith.constant 1.000000e+00 : f32
    %61 = vector.broadcast %cst_32 : f32 to vector<16x128xf32>
    %62 = arith.subf %60, %61 : vector<16x128xf32>
    %cst_33 = arith.constant 1.67326319 : f32
    %63 = vector.broadcast %cst_33 : f32 to vector<16x128xf32>
    %64 = arith.mulf %63, %62 : vector<16x128xf32>
    %65 = arith.select %59, %57, %64 : vector<16x128xi1>, vector<16x128xf32>
    %cst_34 = arith.constant 1.05070102 : f32
    %66 = vector.broadcast %cst_34 : f32 to vector<16x128xf32>
    %67 = arith.mulf %66, %65 : vector<16x128xf32>
    %68 = arith.truncf %67 : vector<16x128xf32> to vector<16x128xbf16>
    %cst_35 = arith.constant dense<0.000000e+00> : vector<8x16xf32>
    %69 = tpu.matmul %38, %68, %cst_35 {dimension_numbers = #tpu.dot_dimension_numbers<[1], [1], [0], [0], [0, 0, 1, 0], [], []>} : vector<8x128xbf16>, vector<16x128xbf16>, vector<8x16xf32> -> vector<8x16xf32>
    %70 = vector.broadcast %39 : vector<8x1xf32> to vector<8x16xf32>
    %71 = arith.addf %69, %70 : vector<8x16xf32>
    %cst_36 = arith.constant dense<0xFF800000> : vector<16xf32>
    %72 = vector.multi_reduction <maximumf>, %71, %cst_36 [0] : vector<8x16xf32> to vector<16xf32>
    %73 = vector.shape_cast %72 : vector<16xf32> to vector<1x16xf32>
    %74 = vector.broadcast %73 : vector<1x16xf32> to vector<8x16xf32>
    %75 = arith.subf %71, %74 : vector<8x16xf32>
    %76 = math.exp %75 : vector<8x16xf32>
    %cst_37 = arith.constant dense<0.000000e+00> : vector<16xf32>
    %77 = vector.multi_reduction <add>, %76, %cst_37 [0] : vector<8x16xf32> to vector<16xf32>
    %78 = vector.shape_cast %77 : vector<16xf32> to vector<1x16xf32>
    %79 = vector.broadcast %78 : vector<1x16xf32> to vector<8x16xf32>
    %80 = arith.divf %76, %79 : vector<8x16xf32>
    %81 = vector.broadcast %43 : vector<1x16xf32> to vector<8x16xf32>
    %82 = arith.mulf %80, %81 : vector<8x16xf32>
    %83 = arith.truncf %82 : vector<8x16xf32> to vector<8x16xbf16>
    %cst_38 = arith.constant dense<0.000000e+00> : vector<8x128xf32>
    %84 = tpu.matmul %83, %68, %cst_38 {dimension_numbers = #tpu.dot_dimension_numbers<[1], [0], [0], [1], [0, 0, 1, 1], [], []>} : vector<8x16xbf16>, vector<16x128xbf16>, vector<8x128xf32> -> vector<8x128xf32>
    %cst_39 = arith.constant 0.000000e+00 : f32
    %85 = vector.broadcast %cst_39 : f32 to vector<8x128xf32>
    %86 = arith.cmpf ogt, %84, %85 : vector<8x128xf32>
    %87 = math.exp %84 : vector<8x128xf32>
    %cst_40 = arith.constant 1.000000e+00 : f32
    %88 = vector.broadcast %cst_40 : f32 to vector<8x128xf32>
    %89 = arith.subf %87, %88 : vector<8x128xf32>
    %cst_41 = arith.constant 1.67326319 : f32
    %90 = vector.broadcast %cst_41 : f32 to vector<8x128xf32>
    %91 = arith.mulf %90, %89 : vector<8x128xf32>
    %92 = arith.select %86, %84, %91 : vector<8x128xi1>, vector<8x128xf32>
    %cst_42 = arith.constant 1.05070102 : f32
    %93 = vector.broadcast %cst_42 : f32 to vector<8x128xf32>
    %94 = arith.mulf %93, %92 : vector<8x128xf32>
    %cst_43 = arith.constant dense<0.000000e+00> : vector<8x16xf32>
    %95 = tpu.matmul %83, %41, %cst_43 {dimension_numbers = #tpu.dot_dimension_numbers<[1], [0], [0], [1], [0, 0, 1, 1], [], []>} : vector<8x16xbf16>, vector<16x16xbf16>, vector<8x16xf32> -> vector<8x16xf32>
    %96 = arith.mulf %95, %82 : vector<8x16xf32>
    %cst_44 = arith.constant dense<0.000000e+00> : vector<8xf32>
    %97 = vector.multi_reduction <add>, %96, %cst_44 [1] : vector<8x16xf32> to vector<8xf32>
    %98 = vector.shape_cast %97 : vector<8xf32> to vector<8x1xf32>
    %cst_45 = arith.constant dense<0.000000e+00> : vector<1xf32>
    %99 = vector.multi_reduction <add>, %98, %cst_45 [0] : vector<8x1xf32> to vector<1xf32>
    %100 = vector.shape_cast %99 : vector<1xf32> to vector<1x1xf32>
    %cst_46 = arith.constant dense<0.000000e+00> : vector<8xf32>
    %101 = vector.multi_reduction <add>, %95, %cst_46 [1] : vector<8x16xf32> to vector<8xf32>
    %102 = vector.shape_cast %101 : vector<8xf32> to vector<8x1xf32>
    %cst_47 = arith.constant dense<0.000000e+00> : vector<16xf32>
    %103 = vector.multi_reduction <add>, %47, %cst_47 [1] : vector<16x1xf32> to vector<16xf32>
    %104 = vector.shape_cast %103 : vector<16xf32> to vector<16x1xf32>
    %cst_48 = arith.constant dense<0.000000e+00> : vector<1xf32>
    %105 = vector.multi_reduction <add>, %104, %cst_48 [0] : vector<16x1xf32> to vector<1xf32>
    %106 = vector.shape_cast %105 : vector<1xf32> to vector<1x1xf32>
    %cst_49 = arith.constant 1.600000e+01 : f32
    %107 = vector.broadcast %cst_49 : f32 to vector<1x1xf32>
    %108 = arith.subf %106, %107 : vector<1x1xf32>
    %cst_50 = arith.constant 9.99999996E-13 : f32
    %109 = vector.broadcast %cst_50 : f32 to vector<1x1xf32>
    %110 = arith.maximumf %108, %109 : vector<1x1xf32>
    %111 = arith.mulf %102, %102 : vector<8x1xf32>
    %cst_51 = arith.constant dense<0.000000e+00> : vector<8xf32>
    %112 = vector.multi_reduction <add>, %111, %cst_51 [1] : vector<8x1xf32> to vector<8xf32>
    %113 = vector.shape_cast %112 : vector<8xf32> to vector<8x1xf32>
    %cst_52 = arith.constant dense<0.000000e+00> : vector<1xf32>
    %114 = vector.multi_reduction <add>, %113, %cst_52 [0] : vector<8x1xf32> to vector<1xf32>
    %115 = vector.shape_cast %114 : vector<1xf32> to vector<1x1xf32>
    %116 = arith.divf %115, %110 : vector<1x1xf32>
    %117 = arith.subf %100, %116 : vector<1x1xf32>
    %cst_53 = arith.constant 0.000000e+00 : f32
    %118 = vector.broadcast %cst_53 : f32 to vector<1x1xf32>
    %119 = arith.subf %118, %117 : vector<1x1xf32>
    %120 = arith.divf %119, %110 : vector<1x1xf32>
    %cst_54 = arith.constant dense<0.000000e+00> : vector<8x8xf32>
    %121 = tpu.matmul %83, %83, %cst_54 {dimension_numbers = #tpu.dot_dimension_numbers<[1], [1], [0], [0], [0, 0, 1, 0], [], []>} : vector<8x16xbf16>, vector<8x16xbf16>, vector<8x8xf32> -> vector<8x8xf32>
    %122 = arith.mulf %121, %121 : vector<8x8xf32>
    %cst_55 = arith.constant dense<0.000000e+00> : vector<8xf32>
    %123 = vector.multi_reduction <add>, %122, %cst_55 [1] : vector<8x8xf32> to vector<8xf32>
    %124 = vector.shape_cast %123 : vector<8xf32> to vector<8x1xf32>
    %cst_56 = arith.constant dense<0.000000e+00> : vector<1xf32>
    %125 = vector.multi_reduction <add>, %124, %cst_56 [0] : vector<8x1xf32> to vector<1xf32>
    %126 = vector.shape_cast %125 : vector<1xf32> to vector<1x1xf32>
    %127 = math.sqrt %126 : vector<1x1xf32>
    %cst_57 = arith.constant 9.99999996E-13 : f32
    %128 = vector.broadcast %cst_57 : f32 to vector<1x1xf32>
    %129 = arith.maximumf %127, %128 : vector<1x1xf32>
    %130 = arith.mulf %82, %82 : vector<8x16xf32>
    %cst_58 = arith.constant dense<0.000000e+00> : vector<8xf32>
    %131 = vector.multi_reduction <add>, %130, %cst_58 [1] : vector<8x16xf32> to vector<8xf32>
    %132 = vector.shape_cast %131 : vector<8xf32> to vector<8x1xf32>
    %cst_59 = arith.constant dense<0.000000e+00> : vector<1xf32>
    %133 = vector.multi_reduction <add>, %132, %cst_59 [0] : vector<8x1xf32> to vector<1xf32>
    %134 = vector.shape_cast %133 : vector<1xf32> to vector<1x1xf32>
    %cst_60 = arith.constant 2.000000e+00 : f32
    %135 = vector.broadcast %cst_60 : f32 to vector<1x1xf32>
    %136 = arith.mulf %135, %134 : vector<1x1xf32>
    %cst_61 = arith.constant 0.353553385 : f32
    %137 = vector.broadcast %cst_61 : f32 to vector<1x1xf32>
    %138 = arith.mulf %136, %137 : vector<1x1xf32>
    %139 = arith.divf %138, %129 : vector<1x1xf32>
    %cst_62 = arith.constant 2.000000e+00 : f32
    %140 = vector.broadcast %cst_62 : f32 to vector<1x1xf32>
    %141 = arith.subf %140, %139 : vector<1x1xf32>
    %cst_63 = arith.constant 0.000000e+00 : f32
    %142 = vector.broadcast %cst_63 : f32 to vector<1x1xf32>
    %143 = arith.maximumf %141, %142 : vector<1x1xf32>
    %144 = math.sqrt %143 : vector<1x1xf32>
    %cst_64 = arith.constant dense<0.000000e+00> : vector<8xf32>
    %145 = vector.multi_reduction <add>, %82, %cst_64 [1] : vector<8x16xf32> to vector<8xf32>
    %146 = vector.shape_cast %145 : vector<8xf32> to vector<8x1xf32>
    %147 = arith.mulf %146, %146 : vector<8x1xf32>
    %cst_65 = arith.constant dense<0.000000e+00> : vector<8xf32>
    %148 = vector.multi_reduction <add>, %147, %cst_65 [1] : vector<8x1xf32> to vector<8xf32>
    %149 = vector.shape_cast %148 : vector<8xf32> to vector<8x1xf32>
    %cst_66 = arith.constant dense<0.000000e+00> : vector<1xf32>
    %150 = vector.multi_reduction <add>, %149, %cst_66 [0] : vector<8x1xf32> to vector<1xf32>
    %151 = vector.shape_cast %150 : vector<1xf32> to vector<1x1xf32>
    %152 = math.sqrt %151 : vector<1x1xf32>
    %cst_67 = arith.constant dense<0xFF800000> : vector<8xf32>
    %153 = vector.multi_reduction <maximumf>, %94, %cst_67 [1] : vector<8x128xf32> to vector<8xf32>
    %154 = vector.shape_cast %153 : vector<8xf32> to vector<8x1xf32>
    %155 = vector.broadcast %154 : vector<8x1xf32> to vector<8x128xf32>
    %156 = arith.subf %94, %155 : vector<8x128xf32>
    %157 = math.exp %156 : vector<8x128xf32>
    %cst_68 = arith.constant dense<0.000000e+00> : vector<8xf32>
    %158 = vector.multi_reduction <add>, %157, %cst_68 [1] : vector<8x128xf32> to vector<8xf32>
    %159 = vector.shape_cast %158 : vector<8xf32> to vector<8x1xf32>
    %160 = math.log %159 : vector<8x1xf32>
    %161 = vector.broadcast %160 : vector<8x1xf32> to vector<8x128xf32>
    %162 = arith.subf %156, %161 : vector<8x128xf32>
    %c0_69 = arith.constant 0 : index
    %c0_70 = arith.constant 0 : index
    %c0_71 = arith.constant 0 : index
    %163 = vector.load %arg11[%c0_69, %c0_70, %c0_71] : memref<2x8x128xf32, #tpu.memory_space<vmem>>, vector<1x8x128xf32>
    %164 = vector.shape_cast %163 : vector<1x8x128xf32> to vector<8x128xf32>
    %165 = vector.shape_cast %162 : vector<8x128xf32> to vector<1x8x128xf32>
    tpu.vector_store %arg11[%c0_69, %c0_70, %c0_71], %165 {strides = array<i32>} : memref<2x8x128xf32, #tpu.memory_space<vmem>>, vector<1x8x128xf32>,
    %c0_72 = arith.constant 0 : index
    %c0_73 = arith.constant 0 : index
    %c0_74 = arith.constant 0 : index
    %166 = vector.load %arg12[%c0_72, %c0_73, %c0_74] : memref<2x8x16xf32, #tpu.memory_space<vmem>>, vector<1x8x16xf32>
    %167 = vector.shape_cast %166 : vector<1x8x16xf32> to vector<8x16xf32>
    %168 = vector.shape_cast %82 : vector<8x16xf32> to vector<1x8x16xf32>
    tpu.vector_store %arg12[%c0_72, %c0_73, %c0_74], %168 {strides = array<i32>} : memref<2x8x16xf32, #tpu.memory_space<vmem>>, vector<1x8x16xf32>,
    %169 = vector.extract_strided_slice %3 {offsets = [0, 0, 0], sizes = [1, 1, 1], strides = [1, 1, 1]} : vector<2x1x1xf32> to vector<1x1x1xf32>
    %170 = vector.shape_cast %169 : vector<1x1x1xf32> to vector<1x1xf32>
    %171 = tpu.concatenate %120, %144, %152, %170 in 1 : vector<1x1xf32>, vector<1x1xf32>, vector<1x1xf32>, vector<1x1xf32> -> vector<1x4xf32>
    %c0_75 = arith.constant 0 : index
    %c0_76 = arith.constant 0 : index
    %c0_77 = arith.constant 0 : index
    %172 = vector.load %arg13[%c0_75, %c0_76, %c0_77] : memref<2x1x4xf32, #tpu.memory_space<vmem>>, vector<1x1x4xf32>
    %173 = vector.shape_cast %172 : vector<1x1x4xf32> to vector<1x4xf32>
    %174 = vector.shape_cast %171 : vector<1x4xf32> to vector<1x1x4xf32>
    tpu.vector_store %arg13[%c0_75, %c0_76, %c0_77], %174 {strides = array<i32>} : memref<2x1x4xf32, #tpu.memory_space<vmem>>, vector<1x1x4xf32>,
    %c1 = arith.constant 1 : index
    %c0_78 = arith.constant 0 : index
    %c0_79 = arith.constant 0 : index
    %175 = vector.load %arg2[%c1, %c0_78, %c0_79] : memref<2x16x16xbf16, #tpu.memory_space<vmem>>, vector<1x16x16xbf16>
    %176 = vector.shape_cast %175 : vector<1x16x16xbf16> to vector<16x16xbf16>
    %177 = vector.extract_strided_slice %1 {offsets = [1, 0, 0], sizes = [1, 1, 16], strides = [1, 1, 1]} : vector<2x1x16xf32> to vector<1x1x16xf32>
    %178 = vector.shape_cast %177 : vector<1x1x16xf32> to vector<1x16xf32>
    %179 = vector.extract_strided_slice %35 {offsets = [16, 0], sizes = [16, 128], strides = [1, 1]} : vector<32x128xf32> to vector<16x128xf32>
    %cst_80 = arith.constant dense<0.000000e+00> : vector<16x1xf32>
    %180 = tpu.matmul %176, %36, %cst_80 {dimension_numbers = #tpu.dot_dimension_numbers<[0], [0], [1], [1], [0, 1, 1, 1], [], []>} : vector<16x16xbf16>, vector<16x1xbf16>, vector<16x1xf32> -> vector<16x1xf32>
    %cst_81 = arith.constant 1.000000e+00 : f32
    %181 = vector.broadcast %cst_81 : f32 to vector<16x1xf32>
    %182 = arith.addf %180, %181 : vector<16x1xf32>
    %183 = math.rsqrt %182 : vector<16x1xf32>
    %184 = vector.broadcast %183 : vector<16x1xf32> to vector<16x128xf32>
    %185 = arith.mulf %179, %184 : vector<16x128xf32>
    %186 = arith.truncf %185 : vector<16x128xf32> to vector<16x128xbf16>
    %cst_82 = arith.constant dense<0.000000e+00> : vector<16x128xf32>
    %187 = tpu.matmul %176, %186, %cst_82 {dimension_numbers = #tpu.dot_dimension_numbers<[0], [0], [1], [1], [0, 1, 1, 1], [], []>} : vector<16x16xbf16>, vector<16x128xbf16>, vector<16x128xf32> -> vector<16x128xf32>
    %188 = arith.addf %187, %185 : vector<16x128xf32>
    %189 = vector.broadcast %183 : vector<16x1xf32> to vector<16x128xf32>
    %190 = arith.mulf %188, %189 : vector<16x128xf32>
    %191 = vector.broadcast %37 : vector<1x128xf32> to vector<16x128xf32>
    %192 = arith.addf %190, %191 : vector<16x128xf32>
    %cst_83 = arith.constant 0.000000e+00 : f32
    %193 = vector.broadcast %cst_83 : f32 to vector<16x128xf32>
    %194 = arith.cmpf ogt, %192, %193 : vector<16x128xf32>
    %195 = math.exp %192 : vector<16x128xf32>
    %cst_84 = arith.constant 1.000000e+00 : f32
    %196 = vector.broadcast %cst_84 : f32 to vector<16x128xf32>
    %197 = arith.subf %195, %196 : vector<16x128xf32>
    %cst_85 = arith.constant 1.67326319 : f32
    %198 = vector.broadcast %cst_85 : f32 to vector<16x128xf32>
    %199 = arith.mulf %198, %197 : vector<16x128xf32>
    %200 = arith.select %194, %192, %199 : vector<16x128xi1>, vector<16x128xf32>
    %cst_86 = arith.constant 1.05070102 : f32
    %201 = vector.broadcast %cst_86 : f32 to vector<16x128xf32>
    %202 = arith.mulf %201, %200 : vector<16x128xf32>
    %203 = arith.truncf %202 : vector<16x128xf32> to vector<16x128xbf16>
    %cst_87 = arith.constant dense<0.000000e+00> : vector<8x16xf32>
    %204 = tpu.matmul %38, %203, %cst_87 {dimension_numbers = #tpu.dot_dimension_numbers<[1], [1], [0], [0], [0, 0, 1, 0], [], []>} : vector<8x128xbf16>, vector<16x128xbf16>, vector<8x16xf32> -> vector<8x16xf32>
    %205 = vector.broadcast %39 : vector<8x1xf32> to vector<8x16xf32>
    %206 = arith.addf %204, %205 : vector<8x16xf32>
    %cst_88 = arith.constant dense<0xFF800000> : vector<16xf32>
    %207 = vector.multi_reduction <maximumf>, %206, %cst_88 [0] : vector<8x16xf32> to vector<16xf32>
    %208 = vector.shape_cast %207 : vector<16xf32> to vector<1x16xf32>
    %209 = vector.broadcast %208 : vector<1x16xf32> to vector<8x16xf32>
    %210 = arith.subf %206, %209 : vector<8x16xf32>
    %211 = math.exp %210 : vector<8x16xf32>
    %cst_89 = arith.constant dense<0.000000e+00> : vector<16xf32>
    %212 = vector.multi_reduction <add>, %211, %cst_89 [0] : vector<8x16xf32> to vector<16xf32>
    %213 = vector.shape_cast %212 : vector<16xf32> to vector<1x16xf32>
    %214 = vector.broadcast %213 : vector<1x16xf32> to vector<8x16xf32>
    %215 = arith.divf %211, %214 : vector<8x16xf32>
    %216 = vector.broadcast %178 : vector<1x16xf32> to vector<8x16xf32>
    %217 = arith.mulf %215, %216 : vector<8x16xf32>
    %218 = arith.truncf %217 : vector<8x16xf32> to vector<8x16xbf16>
    %cst_90 = arith.constant dense<0.000000e+00> : vector<8x128xf32>
    %219 = tpu.matmul %218, %203, %cst_90 {dimension_numbers = #tpu.dot_dimension_numbers<[1], [0], [0], [1], [0, 0, 1, 1], [], []>} : vector<8x16xbf16>, vector<16x128xbf16>, vector<8x128xf32> -> vector<8x128xf32>
    %cst_91 = arith.constant 0.000000e+00 : f32
    %220 = vector.broadcast %cst_91 : f32 to vector<8x128xf32>
    %221 = arith.cmpf ogt, %219, %220 : vector<8x128xf32>
    %222 = math.exp %219 : vector<8x128xf32>
    %cst_92 = arith.constant 1.000000e+00 : f32
    %223 = vector.broadcast %cst_92 : f32 to vector<8x128xf32>
    %224 = arith.subf %222, %223 : vector<8x128xf32>
    %cst_93 = arith.constant 1.67326319 : f32
    %225 = vector.broadcast %cst_93 : f32 to vector<8x128xf32>
    %226 = arith.mulf %225, %224 : vector<8x128xf32>
    %227 = arith.select %221, %219, %226 : vector<8x128xi1>, vector<8x128xf32>
    %cst_94 = arith.constant 1.05070102 : f32
    %228 = vector.broadcast %cst_94 : f32 to vector<8x128xf32>
    %229 = arith.mulf %228, %227 : vector<8x128xf32>
    %cst_95 = arith.constant dense<0.000000e+00> : vector<8x16xf32>
    %230 = tpu.matmul %218, %176, %cst_95 {dimension_numbers = #tpu.dot_dimension_numbers<[1], [0], [0], [1], [0, 0, 1, 1], [], []>} : vector<8x16xbf16>, vector<16x16xbf16>, vector<8x16xf32> -> vector<8x16xf32>
    %231 = arith.mulf %230, %217 : vector<8x16xf32>
    %cst_96 = arith.constant dense<0.000000e+00> : vector<8xf32>
    %232 = vector.multi_reduction <add>, %231, %cst_96 [1] : vector<8x16xf32> to vector<8xf32>
    %233 = vector.shape_cast %232 : vector<8xf32> to vector<8x1xf32>
    %cst_97 = arith.constant dense<0.000000e+00> : vector<1xf32>
    %234 = vector.multi_reduction <add>, %233, %cst_97 [0] : vector<8x1xf32> to vector<1xf32>
    %235 = vector.shape_cast %234 : vector<1xf32> to vector<1x1xf32>
    %cst_98 = arith.constant dense<0.000000e+00> : vector<8xf32>
    %236 = vector.multi_reduction <add>, %230, %cst_98 [1] : vector<8x16xf32> to vector<8xf32>
    %237 = vector.shape_cast %236 : vector<8xf32> to vector<8x1xf32>
    %cst_99 = arith.constant dense<0.000000e+00> : vector<16xf32>
    %238 = vector.multi_reduction <add>, %182, %cst_99 [1] : vector<16x1xf32> to vector<16xf32>
    %239 = vector.shape_cast %238 : vector<16xf32> to vector<16x1xf32>
    %cst_100 = arith.constant dense<0.000000e+00> : vector<1xf32>
    %240 = vector.multi_reduction <add>, %239, %cst_100 [0] : vector<16x1xf32> to vector<1xf32>
    %241 = vector.shape_cast %240 : vector<1xf32> to vector<1x1xf32>
    %cst_101 = arith.constant 1.600000e+01 : f32
    %242 = vector.broadcast %cst_101 : f32 to vector<1x1xf32>
    %243 = arith.subf %241, %242 : vector<1x1xf32>
    %cst_102 = arith.constant 9.99999996E-13 : f32
    %244 = vector.broadcast %cst_102 : f32 to vector<1x1xf32>
    %245 = arith.maximumf %243, %244 : vector<1x1xf32>
    %246 = arith.mulf %237, %237 : vector<8x1xf32>
    %cst_103 = arith.constant dense<0.000000e+00> : vector<8xf32>
    %247 = vector.multi_reduction <add>, %246, %cst_103 [1] : vector<8x1xf32> to vector<8xf32>
    %248 = vector.shape_cast %247 : vector<8xf32> to vector<8x1xf32>
    %cst_104 = arith.constant dense<0.000000e+00> : vector<1xf32>
    %249 = vector.multi_reduction <add>, %248, %cst_104 [0] : vector<8x1xf32> to vector<1xf32>
    %250 = vector.shape_cast %249 : vector<1xf32> to vector<1x1xf32>
    %251 = arith.divf %250, %245 : vector<1x1xf32>
    %252 = arith.subf %235, %251 : vector<1x1xf32>
    %cst_105 = arith.constant 0.000000e+00 : f32
    %253 = vector.broadcast %cst_105 : f32 to vector<1x1xf32>
    %254 = arith.subf %253, %252 : vector<1x1xf32>
    %255 = arith.divf %254, %245 : vector<1x1xf32>
    %cst_106 = arith.constant dense<0.000000e+00> : vector<8x8xf32>
    %256 = tpu.matmul %218, %218, %cst_106 {dimension_numbers = #tpu.dot_dimension_numbers<[1], [1], [0], [0], [0, 0, 1, 0], [], []>} : vector<8x16xbf16>, vector<8x16xbf16>, vector<8x8xf32> -> vector<8x8xf32>
    %257 = arith.mulf %256, %256 : vector<8x8xf32>
    %cst_107 = arith.constant dense<0.000000e+00> : vector<8xf32>
    %258 = vector.multi_reduction <add>, %257, %cst_107 [1] : vector<8x8xf32> to vector<8xf32>
    %259 = vector.shape_cast %258 : vector<8xf32> to vector<8x1xf32>
    %cst_108 = arith.constant dense<0.000000e+00> : vector<1xf32>
    %260 = vector.multi_reduction <add>, %259, %cst_108 [0] : vector<8x1xf32> to vector<1xf32>
    %261 = vector.shape_cast %260 : vector<1xf32> to vector<1x1xf32>
    %262 = math.sqrt %261 : vector<1x1xf32>
    %cst_109 = arith.constant 9.99999996E-13 : f32
    %263 = vector.broadcast %cst_109 : f32 to vector<1x1xf32>
    %264 = arith.maximumf %262, %263 : vector<1x1xf32>
    %265 = arith.mulf %217, %217 : vector<8x16xf32>
    %cst_110 = arith.constant dense<0.000000e+00> : vector<8xf32>
    %266 = vector.multi_reduction <add>, %265, %cst_110 [1] : vector<8x16xf32> to vector<8xf32>
    %267 = vector.shape_cast %266 : vector<8xf32> to vector<8x1xf32>
    %cst_111 = arith.constant dense<0.000000e+00> : vector<1xf32>
    %268 = vector.multi_reduction <add>, %267, %cst_111 [0] : vector<8x1xf32> to vector<1xf32>
    %269 = vector.shape_cast %268 : vector<1xf32> to vector<1x1xf32>
    %cst_112 = arith.constant 2.000000e+00 : f32
    %270 = vector.broadcast %cst_112 : f32 to vector<1x1xf32>
    %271 = arith.mulf %270, %269 : vector<1x1xf32>
    %cst_113 = arith.constant 0.353553385 : f32
    %272 = vector.broadcast %cst_113 : f32 to vector<1x1xf32>
    %273 = arith.mulf %271, %272 : vector<1x1xf32>
    %274 = arith.divf %273, %264 : vector<1x1xf32>
    %cst_114 = arith.constant 2.000000e+00 : f32
    %275 = vector.broadcast %cst_114 : f32 to vector<1x1xf32>
    %276 = arith.subf %275, %274 : vector<1x1xf32>
    %cst_115 = arith.constant 0.000000e+00 : f32
    %277 = vector.broadcast %cst_115 : f32 to vector<1x1xf32>
    %278 = arith.maximumf %276, %277 : vector<1x1xf32>
    %279 = math.sqrt %278 : vector<1x1xf32>
    %cst_116 = arith.constant dense<0.000000e+00> : vector<8xf32>
    %280 = vector.multi_reduction <add>, %217, %cst_116 [1] : vector<8x16xf32> to vector<8xf32>
    %281 = vector.shape_cast %280 : vector<8xf32> to vector<8x1xf32>
    %282 = arith.mulf %281, %281 : vector<8x1xf32>
    %cst_117 = arith.constant dense<0.000000e+00> : vector<8xf32>
    %283 = vector.multi_reduction <add>, %282, %cst_117 [1] : vector<8x1xf32> to vector<8xf32>
    %284 = vector.shape_cast %283 : vector<8xf32> to vector<8x1xf32>
    %cst_118 = arith.constant dense<0.000000e+00> : vector<1xf32>
    %285 = vector.multi_reduction <add>, %284, %cst_118 [0] : vector<8x1xf32> to vector<1xf32>
    %286 = vector.shape_cast %285 : vector<1xf32> to vector<1x1xf32>
    %287 = math.sqrt %286 : vector<1x1xf32>
    %cst_119 = arith.constant dense<0xFF800000> : vector<8xf32>
    %288 = vector.multi_reduction <maximumf>, %229, %cst_119 [1] : vector<8x128xf32> to vector<8xf32>
    %289 = vector.shape_cast %288 : vector<8xf32> to vector<8x1xf32>
    %290 = vector.broadcast %289 : vector<8x1xf32> to vector<8x128xf32>
    %291 = arith.subf %229, %290 : vector<8x128xf32>
    %292 = math.exp %291 : vector<8x128xf32>
    %cst_120 = arith.constant dense<0.000000e+00> : vector<8xf32>
    %293 = vector.multi_reduction <add>, %292, %cst_120 [1] : vector<8x128xf32> to vector<8xf32>
    %294 = vector.shape_cast %293 : vector<8xf32> to vector<8x1xf32>
    %295 = math.log %294 : vector<8x1xf32>
    %296 = vector.broadcast %295 : vector<8x1xf32> to vector<8x128xf32>
    %297 = arith.subf %291, %296 : vector<8x128xf32>
    %c1_121 = arith.constant 1 : index
    %c0_122 = arith.constant 0 : index
    %c0_123 = arith.constant 0 : index
    %298 = vector.load %arg11[%c1_121, %c0_122, %c0_123] : memref<2x8x128xf32, #tpu.memory_space<vmem>>, vector<1x8x128xf32>
    %299 = vector.shape_cast %298 : vector<1x8x128xf32> to vector<8x128xf32>
    %300 = vector.shape_cast %297 : vector<8x128xf32> to vector<1x8x128xf32>
    tpu.vector_store %arg11[%c1_121, %c0_122, %c0_123], %300 {strides = array<i32>} : memref<2x8x128xf32, #tpu.memory_space<vmem>>, vector<1x8x128xf32>,
    %c1_124 = arith.constant 1 : index
    %c0_125 = arith.constant 0 : index
    %c0_126 = arith.constant 0 : index
    %301 = vector.load %arg12[%c1_124, %c0_125, %c0_126] : memref<2x8x16xf32, #tpu.memory_space<vmem>>, vector<1x8x16xf32>
    %302 = vector.shape_cast %301 : vector<1x8x16xf32> to vector<8x16xf32>
    %303 = vector.shape_cast %217 : vector<8x16xf32> to vector<1x8x16xf32>
    tpu.vector_store %arg12[%c1_124, %c0_125, %c0_126], %303 {strides = array<i32>} : memref<2x8x16xf32, #tpu.memory_space<vmem>>, vector<1x8x16xf32>,
    %304 = vector.extract_strided_slice %3 {offsets = [1, 0, 0], sizes = [1, 1, 1], strides = [1, 1, 1]} : vector<2x1x1xf32> to vector<1x1x1xf32>
    %305 = vector.shape_cast %304 : vector<1x1x1xf32> to vector<1x1xf32>
    %306 = tpu.concatenate %255, %279, %287, %305 in 1 : vector<1x1xf32>, vector<1x1xf32>, vector<1x1xf32>, vector<1x1xf32> -> vector<1x4xf32>
    %c1_127 = arith.constant 1 : index
    %c0_128 = arith.constant 0 : index
    %c0_129 = arith.constant 0 : index
    %307 = vector.load %arg13[%c1_127, %c0_128, %c0_129] : memref<2x1x4xf32, #tpu.memory_space<vmem>>, vector<1x1x4xf32>
    %308 = vector.shape_cast %307 : vector<1x1x4xf32> to vector<1x4xf32>
    %309 = vector.shape_cast %306 : vector<1x4xf32> to vector<1x1x4xf32>
    tpu.vector_store %arg13[%c1_127, %c0_128, %c0_129], %309 {strides = array<i32>} : memref<2x1x4xf32, #tpu.memory_space<vmem>>, vector<1x1x4xf32>,
    return
  }
  func.func @transform_0(%arg0: i32) -> (i32, i32, i32) {
    %c0_i32 = arith.constant 0 : i32
    %c0_i32_0 = arith.constant 0 : i32
    %c0_i32_1 = arith.constant 0 : i32
    return %arg0, %c0_i32, %c0_i32_0 : i32, i32, i32
  }
  func.func @transform_1(%arg0: i32) -> (i32, i32, i32) {
    %c0_i32 = arith.constant 0 : i32
    %c0_i32_0 = arith.constant 0 : i32
    %c0_i32_1 = arith.constant 0 : i32
    return %arg0, %c0_i32, %c0_i32_0 : i32, i32, i32
  }
  func.func @transform_2(%arg0: i32) -> (i32, i32, i32) {
    %c0_i32 = arith.constant 0 : i32
    %c0_i32_0 = arith.constant 0 : i32
    %c0_i32_1 = arith.constant 0 : i32
    return %arg0, %c0_i32, %c0_i32_0 : i32, i32, i32
  }
  func.func @transform_3(%arg0: i32) -> (i32, i32) {
    %c0_i32 = arith.constant 0 : i32
    %c0_i32_0 = arith.constant 0 : i32
    %c0_i32_1 = arith.constant 0 : i32
    return %c0_i32, %c0_i32_0 : i32, i32
  }
  func.func @transform_4(%arg0: i32) -> (i32, i32) {
    %c0_i32 = arith.constant 0 : i32
    %c0_i32_0 = arith.constant 0 : i32
    %c0_i32_1 = arith.constant 0 : i32
    return %c0_i32, %c0_i32_0 : i32, i32
  }
  func.func @transform_5(%arg0: i32) -> (i32, i32) {
    %c0_i32 = arith.constant 0 : i32
    %c0_i32_0 = arith.constant 0 : i32
    %c0_i32_1 = arith.constant 0 : i32
    return %c0_i32, %c0_i32_0 : i32, i32
  }
  func.func @transform_6(%arg0: i32) -> (i32, i32) {
    %c0_i32 = arith.constant 0 : i32
    %c0_i32_0 = arith.constant 0 : i32
    %c0_i32_1 = arith.constant 0 : i32
    return %c0_i32, %c0_i32_0 : i32, i32
  }
  func.func @transform_7(%arg0: i32) -> (i32, i32) {
    %c0_i32 = arith.constant 0 : i32
    %c0_i32_0 = arith.constant 0 : i32
    %c0_i32_1 = arith.constant 0 : i32
    return %c0_i32, %c0_i32_0 : i32, i32
  }
  func.func @transform_8(%arg0: i32) -> (i32, i32) {
    %c0_i32 = arith.constant 0 : i32
    %c0_i32_0 = arith.constant 0 : i32
    %c0_i32_1 = arith.constant 0 : i32
    return %c0_i32, %c0_i32_0 : i32, i32
  }
  func.func @transform_9(%arg0: i32) -> (i32, i32) {
    %c0_i32 = arith.constant 0 : i32
    %c0_i32_0 = arith.constant 0 : i32
    %c0_i32_1 = arith.constant 0 : i32
    return %c0_i32, %c0_i32_0 : i32, i32
  }
  func.func @transform_10(%arg0: i32) -> (i32, i32, i32) {
    %c0_i32 = arith.constant 0 : i32
    %c0_i32_0 = arith.constant 0 : i32
    %c0_i32_1 = arith.constant 0 : i32
    return %arg0, %c0_i32, %c0_i32_0 : i32, i32, i32
  }
  func.func @transform_11(%arg0: i32) -> (i32, i32, i32) {
    %c0_i32 = arith.constant 0 : i32
    %c0_i32_0 = arith.constant 0 : i32
    %c0_i32_1 = arith.constant 0 : i32
    return %arg0, %c0_i32, %c0_i32_0 : i32, i32, i32
  }
  func.func @transform_12(%arg0: i32) -> (i32, i32, i32) {
    %c0_i32 = arith.constant 0 : i32
    %c0_i32_0 = arith.constant 0 : i32
    %c0_i32_1 = arith.constant 0 : i32
    return %arg0, %c0_i32, %c0_i32_0 : i32, i32, i32
  }
}

</mosaic_0001>

<llo_original>
// kernel: tpu_custom_call.1
$region0: #{tpu_custom_call.1}
  #allocation0 [shape = 'u32[]', space=smem, size = 0x4, offset = 0x4, fixed_abs, tag = 'smem constant byte address 0x4 - core index']
  #allocation1 [shape = 'u32[144,128]{1,0:T(1,128)}', space=vmem, size = 0x12000, scoped, tag = 'internal scratch']
  %s0 = inlined_call_operand.hbm [shape: f32[2,16,16], index: 0, kind: input, shape index: {}]
  %s1 = inlined_call_operand.hbm [shape: bf16[2,16,16], index: 1, kind: input, shape index: {}]
  %s2 = inlined_call_operand.vmem [shape: f32[2,1,16], index: 2, kind: input, shape index: {}]
  %s3 = inlined_call_operand.vmem [shape: f32[1,16], index: 3, kind: input, shape index: {}]
  %s4 = inlined_call_operand.vmem [shape: f32[1,16], index: 4, kind: input, shape index: {}]
  %s5 = inlined_call_operand.vmem [shape: f32[1,16], index: 5, kind: input, shape index: {}]
  %s6 = inlined_call_operand.vmem [shape: bf16[16,128], index: 6, kind: input, shape index: {}]
  %s7 = inlined_call_operand.vmem [shape: f32[1,128], index: 7, kind: input, shape index: {}]
  %s8 = inlined_call_operand.vmem [shape: bf16[8,128], index: 8, kind: input, shape index: {}]
  %s9 = inlined_call_operand.vmem [shape: f32[8,1], index: 9, kind: input, shape index: {}]
  %s10 = inlined_call_operand.hbm [shape: f32[2,8,128], index: 10, kind: output, shape index: {0}]
  %s11 = inlined_call_operand.hbm [shape: f32[2,8,16], index: 11, kind: output, shape index: {1}]
  %s12 = inlined_call_operand.hbm [shape: f32[2,1,4], index: 12, kind: output, shape index: {2}]
  %13 = xla_tuple %s10, %s11, %s12
  %s14 = sld [smem:[#allocation0]]
  $region74: #{tpu_custom_call.1} parent=0
    _
  %s16 = ssub.s32 1, %s14
  %s17 = scalar_select 0, %s16, %s14
  $region1: #{tpu_custom_call.1} parent=0
    #allocation2 [shape = 'u8[16384]{0}', space=vmem, size = 0x4000, scoped, tag = 'input window, operand 0, single buffered']
    #allocation3 [shape = 's32[1]{0}', space=sflag, size = 0x4, scoped, tag = 'scoped memory for tpu_custom_call.1']
    #allocation4 [shape = 's32[1]{0}', space=sflag, size = 0x4, scoped, tag = 'scoped memory for tpu_custom_call.1']
    #allocation5 [shape = 'u8[8192]{0}', space=vmem, size = 0x2000, scoped, tag = 'input window, operand 1, single buffered']
    #allocation6 [shape = 's32[1]{0}', space=sflag, size = 0x4, scoped, tag = 'scoped memory for tpu_custom_call.1']
    #allocation7 [shape = 'u8[8192]{0}', space=vmem, size = 0x2000, scoped, tag = 'output window, operand 0, single buffered']
    #allocation8 [shape = 'u8[8192]{0}', space=vmem, size = 0x2000, scoped, tag = 'output window, operand 1, single buffered']
    #allocation9 [shape = 's32[1]{0}', space=sflag, size = 0x4, scoped, tag = 'scoped memory for tpu_custom_call.1']
    #allocation10 [shape = 'u8[1024]{0}', space=vmem, size = 0x400, scoped, tag = 'output window, operand 2, single buffered']
    %18 = vsyncpa [#allocation3], 0
    %19 = vsyncpa [#allocation6], 0
    %20 = vsyncpa [#allocation4], 0
    %21 = vsyncpa [#allocation9], 0
    // Predicated region
    $region2: #{tpu_custom_call.1} parent=1 // pred_check
      _
    $region3: #{tpu_custom_call.1} parent=1 // pred_check_branch
      %23 = sbr.rel (0) target = $region5
    $region4: #{tpu_custom_call.1} parent=1 // pred_region
      %s25 = ssub.s32 512, 512
      %26 = vsyncadd [#allocation3], %s25
      %s27 = sshll.u32 [#allocation2], 4
      %s28 = int_to_ptr.vmem [resolvable:$true] %s27
      %33 = dma.hbm_to_vmem [thread:$0]  %s0, 512, %s28, [#allocation3], 128, 128, 8
    $region5: #{tpu_custom_call.1} parent=1 // pred_fallthru
      _
    // Predicated region
    $region6: #{tpu_custom_call.1} parent=1 // pred_check
      _
    $region7: #{tpu_custom_call.1} parent=1 // pred_check_branch
      %35 = sbr.rel (0) target = $region9
    $region8: #{tpu_custom_call.1} parent=1 // pred_region
      %s37 = ssub.s32 256, 256
      %38 = vsyncadd [#allocation6], %s37
      %s39 = sshll.u32 [#allocation5], 4
      %s40 = int_to_ptr.vmem [resolvable:$true] %s39
      %45 = dma.hbm_to_vmem [thread:$0]  %s1, 256, %s40, [#allocation6], 64, 64, 4
    $region9: #{tpu_custom_call.1} parent=1 // pred_fallthru
      _
    // Predicated region
    $region10: #{tpu_custom_call.1} parent=1 // pred_check
      _
    $region11: #{tpu_custom_call.1} parent=1 // pred_check_branch
      %47 = sbr.rel (0) target = $region13
    $region12: #{tpu_custom_call.1} parent=1 // pred_region
      _
    $region13: #{tpu_custom_call.1} parent=1 // pred_fallthru
      _
    // Predicated region
    $region14: #{tpu_custom_call.1} parent=1 // pred_check
      _
    $region15: #{tpu_custom_call.1} parent=1 // pred_check_branch
      %49 = sbr.rel (0) target = $region17
    $region16: #{tpu_custom_call.1} parent=1 // pred_region
      _
    $region17: #{tpu_custom_call.1} parent=1 // pred_fallthru
      _
    // Predicated region
    $region18: #{tpu_custom_call.1} parent=1 // pred_check
      _
    $region19: #{tpu_custom_call.1} parent=1 // pred_check_branch
      %51 = sbr.rel (0) target = $region21
    $region20: #{tpu_custom_call.1} parent=1 // pred_region
      _
    $region21: #{tpu_custom_call.1} parent=1 // pred_fallthru
      _
    // Predicated region
    $region22: #{tpu_custom_call.1} parent=1 // pred_check
      _
    $region23: #{tpu_custom_call.1} parent=1 // pred_check_branch
      %53 = sbr.rel (0) target = $region25
    $region24: #{tpu_custom_call.1} parent=1 // pred_region
      _
    $region25: #{tpu_custom_call.1} parent=1 // pred_fallthru
      _
    // Predicated region
    $region26: #{tpu_custom_call.1} parent=1 // pred_check
      _
    $region27: #{tpu_custom_call.1} parent=1 // pred_check_branch
      %55 = sbr.rel (0) target = $region29
    $region28: #{tpu_custom_call.1} parent=1 // pred_region
      _
    $region29: #{tpu_custom_call.1} parent=1 // pred_fallthru
      _
    // Predicated region
    $region30: #{tpu_custom_call.1} parent=1 // pred_check
      _
    $region31: #{tpu_custom_call.1} parent=1 // pred_check_branch
      %57 = sbr.rel (0) target = $region33
    $region32: #{tpu_custom_call.1} parent=1 // pred_region
      _
    $region33: #{tpu_custom_call.1} parent=1 // pred_fallthru
      _
    // Predicated region
    $region34: #{tpu_custom_call.1} parent=1 // pred_check
      _
    $region35: #{tpu_custom_call.1} parent=1 // pred_check_branch
      %59 = sbr.rel (0) target = $region37
    $region36: #{tpu_custom_call.1} parent=1 // pred_region
      _
    $region37: #{tpu_custom_call.1} parent=1 // pred_fallthru
      _
    // Predicated region
    $region38: #{tpu_custom_call.1} parent=1 // pred_check
      _
    $region39: #{tpu_custom_call.1} parent=1 // pred_check_branch
      %61 = sbr.rel (0) target = $region41
    $region40: #{tpu_custom_call.1} parent=1 // pred_region
      _
    $region41: #{tpu_custom_call.1} parent=1 // pred_fallthru
      _
    // Predicated region
    $region42: #{tpu_custom_call.1} parent=1 // pred_check
      _
    $region43: #{tpu_custom_call.1} parent=1 // pred_check_branch
      %63 = sbr.rel (0) target = $region45
    $region44: #{tpu_custom_call.1} parent=1 // pred_region
      %64 = dma.done [#allocation3], 512
    $region45: #{tpu_custom_call.1} parent=1 // pred_fallthru
      _
    // Predicated region
    $region46: #{tpu_custom_call.1} parent=1 // pred_check
      _
    $region47: #{tpu_custom_call.1} parent=1 // pred_check_branch
      %66 = sbr.rel (0) target = $region49
    $region48: #{tpu_custom_call.1} parent=1 // pred_region
      %67 = dma.done [#allocation6], 256
    $region49: #{tpu_custom_call.1} parent=1 // pred_fallthru
      _
    %v70 = vld [vmem:[#allocation2] sm:$0xff]
    %v71 = vld [vmem:[#allocation2 + $0x8] sm:$0xff]
    %v72 = vld [vmem:[#allocation2 + $0x10] sm:$0xff]
    %v73 = vld [vmem:[#allocation2 + $0x18] sm:$0xff]
    %v74 = vld [vmem:[%s2] sm:$0x1]
    %v75 = vld [vmem:[%s2 + $0x1] sm:$0x1]
    %vm76 = vcmask 122880
    %v77 = vsel %vm76, %v74, 0.0
    %78 = vadd.xlane.f32.xlu0 %v77
    %v79 = vpop.xlane.xlu0 %78
    %v80 = vsel %vm76, %v75, 0.0
    %81 = vadd.xlane.f32.xlu0 %v80
    %v82 = vpop.xlane.xlu0 %81
    %v83 = vmax.f32 %v79, 1.0
    %v84 = vmax.f32 %v82, 1.0
    %v85 = vld [vmem:[%s3] sm:$0x1]
    %v86 = vld [vmem:[%s4] sm:$0x1]
    %v87 = vld [vmem:[%s5] sm:$0x1]
    %vm88 = vcmask 130048
    %v90 = vsel %vm88, %v74, 0
    %92 = vmatprep.subr.mxu0 0.0
    %93 = vmatpush1.msra.mxu0 0.0
    %94 = vmatprep.subr.mxu0 0.0
    %95 = vmatpush1.msra.mxu0 0.0
    %96 = vmatprep.subr.mxu0 0.0
    %97 = vmatpush1.msra.mxu0 0.0
    %98 = vmatprep.subr.mxu0 0.0
    %99 = vmatpush1.msra.mxu0 0.0
    %100 = vmatprep.subr.mxu0 0.0
    %101 = vmatpush1.msra.mxu0 0.0
    %102 = vmatprep.subr.mxu0 0.0
    %103 = vmatpush1.msra.mxu0 0.0
    %104 = vmatprep.subr.mxu0 0.0
    %105 = vmatpush1.msra.mxu0 0.0
    %106 = vmatprep.subr.mxu0 0.0
    %107 = vmatpush1.msra.mxu0 0.0
    %108 = vmatprep.subr.mxu0 0.0
    %109 = vmatpush1.msra.mxu0 0.0
    %110 = vmatprep.subr.mxu0 0.0
    %111 = vmatpush1.msra.mxu0 0.0
    %112 = vmatprep.subr.mxu0 0.0
    %113 = vmatpush1.msra.mxu0 0.0
    %114 = vmatprep.subr.mxu0 0.0
    %115 = vmatpush1.msra.mxu0 0.0
    %116 = vmatprep.subr.mxu0 0.0
    %117 = vmatpush1.msra.mxu0 0.0
    %118 = vmatprep.subr.mxu0 0.0
    %119 = vmatpush1.msra.mxu0 0.0
    %120 = vmatprep.subr.mxu0 0.0
    %121 = vmatpush1.msra.mxu0 %v71
    %122 = vmatprep.subr.mxu0 0.0
    %123 = vmatpush1.msra.mxu0 %v70
    %124 = vmatprep.subr.mxu0 0.0
    %125 = vmatpush2.msra.mxu0 0.0
    %126 = vmatprep.subr.mxu0 0.0
    %127 = vmatpush2.msra.mxu0 0.0
    %128 = vmatprep.subr.mxu0 0.0
    %129 = vmatpush2.msra.mxu0 0.0
    %130 = vmatprep.subr.mxu0 0.0
    %131 = vmatpush2.msra.mxu0 0.0
    %132 = vmatprep.subr.mxu0 0.0
    %133 = vmatpush2.msra.mxu0 0.0
    %134 = vmatprep.subr.mxu0 0.0
    %135 = vmatpush2.msra.mxu0 0.0
    %136 = vmatprep.subr.mxu0 0.0
    %137 = vmatpush2.msra.mxu0 0.0
    %138 = vmatprep.subr.mxu0 0.0
    %139 = vmatpush2.msra.mxu0 0.0
    %140 = vmatprep.subr.mxu0 0.0
    %141 = vmatpush2.msra.mxu0 0.0
    %142 = vmatprep.subr.mxu0 0.0
    %143 = vmatpush2.msra.mxu0 0.0
    %144 = vmatprep.subr.mxu0 0.0
    %145 = vmatpush2.msra.mxu0 0.0
    %146 = vmatprep.subr.mxu0 0.0
    %147 = vmatpush2.msra.mxu0 0.0
    %148 = vmatprep.subr.mxu0 0.0
    %149 = vmatpush2.msra.mxu0 0.0
    %150 = vmatprep.subr.mxu0 0.0
    %151 = vmatpush2.msra.mxu0 0.0
    %152 = vmatprep.subr.mxu0 0.0
    %153 = vmatpush2.msra.mxu0 0.0
    %154 = vmatprep.subr.mxu0 0.0
    %155 = vmatpush2.msra.mxu0 0.0
    %156 = vmatprep.mubr.f32.mxu0 0.0
    %157 = vmatmul.mubr.f32.gmra.mxu0 %v90
    %v158 = vpop.f32.mrf.mxu0
    %v159 = vadd.f32 0.0, %v158
    %v160 = vpop.f32.mrf.mxu0
    %161 = vdwg.mxu0
    %v163 = vsel %vm88, %v75, 0
    %165 = vmatprep.subr.mxu0 0.0
    %166 = vmatpush1.msra.mxu0 0.0
    %167 = vmatprep.subr.mxu0 0.0
    %168 = vmatpush1.msra.mxu0 0.0
    %169 = vmatprep.subr.mxu0 0.0
    %170 = vmatpush1.msra.mxu0 0.0
    %171 = vmatprep.subr.mxu0 0.0
    %172 = vmatpush1.msra.mxu0 0.0
    %173 = vmatprep.subr.mxu0 0.0
    %174 = vmatpush1.msra.mxu0 0.0
    %175 = vmatprep.subr.mxu0 0.0
    %176 = vmatpush1.msra.mxu0 0.0
    %177 = vmatprep.subr.mxu0 0.0
    %178 = vmatpush1.msra.mxu0 0.0
    %179 = vmatprep.subr.mxu0 0.0
    %180 = vmatpush1.msra.mxu0 0.0
    %181 = vmatprep.subr.mxu0 0.0
    %182 = vmatpush1.msra.mxu0 0.0
    %183 = vmatprep.subr.mxu0 0.0
    %184 = vmatpush1.msra.mxu0 0.0
    %185 = vmatprep.subr.mxu0 0.0
    %186 = vmatpush1.msra.mxu0 0.0
    %187 = vmatprep.subr.mxu0 0.0
    %188 = vmatpush1.msra.mxu0 0.0
    %189 = vmatprep.subr.mxu0 0.0
    %190 = vmatpush1.msra.mxu0 0.0
    %191 = vmatprep.subr.mxu0 0.0
    %192 = vmatpush1.msra.mxu0 0.0
    %193 = vmatprep.subr.mxu0 0.0
    %194 = vmatpush1.msra.mxu0 %v73
    %195 = vmatprep.subr.mxu0 0.0
    %196 = vmatpush1.msra.mxu0 %v72
    %197 = vmatprep.subr.mxu0 0.0
    %198 = vmatpush2.msra.mxu0 0.0
    %199 = vmatprep.subr.mxu0 0.0
    %200 = vmatpush2.msra.mxu0 0.0
    %201 = vmatprep.subr.mxu0 0.0
    %202 = vmatpush2.msra.mxu0 0.0
    %203 = vmatprep.subr.mxu0 0.0
    %204 = vmatpush2.msra.mxu0 0.0
    %205 = vmatprep.subr.mxu0 0.0
    %206 = vmatpush2.msra.mxu0 0.0
    %207 = vmatprep.subr.mxu0 0.0
    %208 = vmatpush2.msra.mxu0 0.0
    %209 = vmatprep.subr.mxu0 0.0
    %210 = vmatpush2.msra.mxu0 0.0
    %211 = vmatprep.subr.mxu0 0.0
    %212 = vmatpush2.msra.mxu0 0.0
    %213 = vmatprep.subr.mxu0 0.0
    %214 = vmatpush2.msra.mxu0 0.0
    %215 = vmatprep.subr.mxu0 0.0
    %216 = vmatpush2.msra.mxu0 0.0
    %217 = vmatprep.subr.mxu0 0.0
    %218 = vmatpush2.msra.mxu0 0.0
    %219 = vmatprep.subr.mxu0 0.0
    %220 = vmatpush2.msra.mxu0 0.0
    %221 = vmatprep.subr.mxu0 0.0
    %222 = vmatpush2.msra.mxu0 0.0
    %223 = vmatprep.subr.mxu0 0.0
    %224 = vmatpush2.msra.mxu0 0.0
    %225 = vmatprep.subr.mxu0 0.0
    %226 = vmatpush2.msra.mxu0 0.0
    %227 = vmatprep.subr.mxu0 0.0
    %228 = vmatpush2.msra.mxu0 0.0
    %229 = vmatprep.mubr.f32.mxu0 0.0
    %230 = vmatmul.mubr.f32.gmra.mxu0 %v163
    %v231 = vpop.f32.mrf.mxu0
    %v232 = vadd.f32 0.0, %v231
    %v233 = vpop.f32.mrf.mxu0
    %234 = vdwg.mxu0
    %v235 = vrcp.pop %v83
    %v236 = vmul.f32 %v159, %v235
    %v237 = vrcp.pop %v84
    %v238 = vmul.f32 %v232, %v237
    %v239 = vmul.f32 %v236, %v87
    %v240 = vmul.f32 %v238, %v87
    %v241 = vlaneseq
    %v242 = vshrl.u32 %v241, 7
    %v243 = vsub.s32 0, %v242
    %v244 = vrot.slane %v239, %v243
    %v245 = vlaneseq
    %v246 = vshrl.u32 %v245, 7
    %v247 = vsub.s32 0, %v246
    %v248 = vrot.slane %v240, %v247
    %v249 = vsub.f32 %v70, %v244
    %v250 = vsub.f32 %v71, %v244
    %v251 = vsub.f32 %v72, %v248
    %v252 = vsub.f32 %v73, %v248
    %v253 = vmul.f32 %v249, %v249
    %v254 = vmul.f32 %v250, %v250
    %v255 = vmul.f32 %v251, %v251
    %v256 = vmul.f32 %v252, %v252
    %257 = vmatprep.subr.mxu0 0.0
    %258 = vmatpush1.msra.mxu0 0.0
    %259 = vmatprep.subr.mxu0 0.0
    %260 = vmatpush1.msra.mxu0 0.0
    %261 = vmatprep.subr.mxu0 0.0
    %262 = vmatpush1.msra.mxu0 0.0
    %263 = vmatprep.subr.mxu0 0.0
    %264 = vmatpush1.msra.mxu0 0.0
    %265 = vmatprep.subr.mxu0 0.0
    %266 = vmatpush1.msra.mxu0 0.0
    %267 = vmatprep.subr.mxu0 0.0
    %268 = vmatpush1.msra.mxu0 0.0
    %269 = vmatprep.subr.mxu0 0.0
    %270 = vmatpush1.msra.mxu0 0.0
    %271 = vmatprep.subr.mxu0 0.0
    %272 = vmatpush1.msra.mxu0 0.0
    %273 = vmatprep.subr.mxu0 0.0
    %274 = vmatpush1.msra.mxu0 0.0
    %275 = vmatprep.subr.mxu0 0.0
    %276 = vmatpush1.msra.mxu0 0.0
    %277 = vmatprep.subr.mxu0 0.0
    %278 = vmatpush1.msra.mxu0 0.0
    %279 = vmatprep.subr.mxu0 0.0
    %280 = vmatpush1.msra.mxu0 0.0
    %281 = vmatprep.subr.mxu0 0.0
    %282 = vmatpush1.msra.mxu0 0.0
    %283 = vmatprep.subr.mxu0 0.0
    %284 = vmatpush1.msra.mxu0 0.0
    %285 = vmatprep.subr.mxu0 0.0
    %286 = vmatpush1.msra.mxu0 %v254
    %287 = vmatprep.subr.mxu0 0.0
    %288 = vmatpush1.msra.mxu0 %v253
    %289 = vmatprep.subr.mxu0 0.0
    %290 = vmatpush2.msra.mxu0 0.0
    %291 = vmatprep.subr.mxu0 0.0
    %292 = vmatpush2.msra.mxu0 0.0
    %293 = vmatprep.subr.mxu0 0.0
    %294 = vmatpush2.msra.mxu0 0.0
    %295 = vmatprep.subr.mxu0 0.0
    %296 = vmatpush2.msra.mxu0 0.0
    %297 = vmatprep.subr.mxu0 0.0
    %298 = vmatpush2.msra.mxu0 0.0
    %299 = vmatprep.subr.mxu0 0.0
    %300 = vmatpush2.msra.mxu0 0.0
    %301 = vmatprep.subr.mxu0 0.0
    %302 = vmatpush2.msra.mxu0 0.0
    %303 = vmatprep.subr.mxu0 0.0
    %304 = vmatpush2.msra.mxu0 0.0
    %305 = vmatprep.subr.mxu0 0.0
    %306 = vmatpush2.msra.mxu0 0.0
    %307 = vmatprep.subr.mxu0 0.0
    %308 = vmatpush2.msra.mxu0 0.0
    %309 = vmatprep.subr.mxu0 0.0
    %310 = vmatpush2.msra.mxu0 0.0
    %311 = vmatprep.subr.mxu0 0.0
    %312 = vmatpush2.msra.mxu0 0.0
    %313 = vmatprep.subr.mxu0 0.0
    %314 = vmatpush2.msra.mxu0 0.0
    %315 = vmatprep.subr.mxu0 0.0
    %316 = vmatpush2.msra.mxu0 0.0
    %317 = vmatprep.subr.mxu0 0.0
    %318 = vmatpush2.msra.mxu0 0.0
    %319 = vmatprep.subr.mxu0 0.0
    %320 = vmatpush2.msra.mxu0 0.0
    %321 = vmatprep.mubr.f32.mxu0 0.0
    %322 = vmatmul.mubr.f32.gmra.mxu0 %v90
    %v323 = vpop.f32.mrf.mxu0
    %v324 = vadd.f32 0.0, %v323
    %v325 = vpop.f32.mrf.mxu0
    %326 = vdwg.mxu0
    %327 = vmatprep.subr.mxu0 0.0
    %328 = vmatpush1.msra.mxu0 0.0
    %329 = vmatprep.subr.mxu0 0.0
    %330 = vmatpush1.msra.mxu0 0.0
    %331 = vmatprep.subr.mxu0 0.0
    %332 = vmatpush1.msra.mxu0 0.0
    %333 = vmatprep.subr.mxu0 0.0
    %334 = vmatpush1.msra.mxu0 0.0
    %335 = vmatprep.subr.mxu0 0.0
    %336 = vmatpush1.msra.mxu0 0.0
    %337 = vmatprep.subr.mxu0 0.0
    %338 = vmatpush1.msra.mxu0 0.0
    %339 = vmatprep.subr.mxu0 0.0
    %340 = vmatpush1.msra.mxu0 0.0
    %341 = vmatprep.subr.mxu0 0.0
    %342 = vmatpush1.msra.mxu0 0.0
    %343 = vmatprep.subr.mxu0 0.0
    %344 = vmatpush1.msra.mxu0 0.0
    %345 = vmatprep.subr.mxu0 0.0
    %346 = vmatpush1.msra.mxu0 0.0
    %347 = vmatprep.subr.mxu0 0.0
    %348 = vmatpush1.msra.mxu0 0.0
    %349 = vmatprep.subr.mxu0 0.0
    %350 = vmatpush1.msra.mxu0 0.0
    %351 = vmatprep.subr.mxu0 0.0
    %352 = vmatpush1.msra.mxu0 0.0
    %353 = vmatprep.subr.mxu0 0.0
    %354 = vmatpush1.msra.mxu0 0.0
    %355 = vmatprep.subr.mxu0 0.0
    %356 = vmatpush1.msra.mxu0 %v256
    %357 = vmatprep.subr.mxu0 0.0
    %358 = vmatpush1.msra.mxu0 %v255
    %359 = vmatprep.subr.mxu0 0.0
    %360 = vmatpush2.msra.mxu0 0.0
    %361 = vmatprep.subr.mxu0 0.0
    %362 = vmatpush2.msra.mxu0 0.0
    %363 = vmatprep.subr.mxu0 0.0
    %364 = vmatpush2.msra.mxu0 0.0
    %365 = vmatprep.subr.mxu0 0.0
    %366 = vmatpush2.msra.mxu0 0.0
    %367 = vmatprep.subr.mxu0 0.0
    %368 = vmatpush2.msra.mxu0 0.0
    %369 = vmatprep.subr.mxu0 0.0
    %370 = vmatpush2.msra.mxu0 0.0
    %371 = vmatprep.subr.mxu0 0.0
    %372 = vmatpush2.msra.mxu0 0.0
    %373 = vmatprep.subr.mxu0 0.0
    %374 = vmatpush2.msra.mxu0 0.0
    %375 = vmatprep.subr.mxu0 0.0
    %376 = vmatpush2.msra.mxu0 0.0
    %377 = vmatprep.subr.mxu0 0.0
    %378 = vmatpush2.msra.mxu0 0.0
    %379 = vmatprep.subr.mxu0 0.0
    %380 = vmatpush2.msra.mxu0 0.0
    %381 = vmatprep.subr.mxu0 0.0
    %382 = vmatpush2.msra.mxu0 0.0
    %383 = vmatprep.subr.mxu0 0.0
    %384 = vmatpush2.msra.mxu0 0.0
    %385 = vmatprep.subr.mxu0 0.0
    %386 = vmatpush2.msra.mxu0 0.0
    %387 = vmatprep.subr.mxu0 0.0
    %388 = vmatpush2.msra.mxu0 0.0
    %389 = vmatprep.subr.mxu0 0.0
    %390 = vmatpush2.msra.mxu0 0.0
    %391 = vmatprep.mubr.f32.mxu0 0.0
    %392 = vmatmul.mubr.f32.gmra.mxu0 %v163
    %v393 = vpop.f32.mrf.mxu0
    %v394 = vadd.f32 0.0, %v393
    %v395 = vpop.f32.mrf.mxu0
    %396 = vdwg.mxu0
    %v397 = vmul.f32 %v324, %v235
    %v398 = vmul.f32 %v394, %v237
    %v400 = vlaneseq
    %v401 = vshrl.u32 %v400, 7
    %v402 = vsub.s32 0, %v401
    %v403 = vrot.slane %v85, %v402
    %v405 = vmul.f32 %v403, %v249
    %v406 = vmul.f32 %v403, %v250
    %v407 = vmul.f32 %v403, %v251
    %v408 = vmul.f32 %v403, %v252
    %v409 = vadd.f32 %v397, 1e-05
    %v410 = vadd.f32 %v398, 1e-05
    %v411 = vrsqrt.pop %v409
    %v412 = vrsqrt.pop %v410
    %v413 = vlaneseq
    %v414 = vshrl.u32 %v413, 7
    %v415 = vsub.s32 0, %v414
    %v416 = vrot.slane %v411, %v415
    %v417 = vlaneseq
    %v418 = vshrl.u32 %v417, 7
    %v419 = vsub.s32 0, %v418
    %v420 = vrot.slane %v412, %v419
    %v421 = vmul.f32 %v405, %v416
    %v422 = vmul.f32 %v406, %v416
    %v423 = vmul.f32 %v407, %v420
    %v424 = vmul.f32 %v408, %v420
    %v426 = vlaneseq
    %v427 = vshrl.u32 %v426, 7
    %v428 = vsub.s32 0, %v427
    %v429 = vrot.slane %v86, %v428
    %v431 = vadd.f32 %v421, %v429
    %v432 = vadd.f32 %v422, %v429
    %v433 = vadd.f32 %v423, %v429
    %v434 = vadd.f32 %v424, %v429
    %v435 = vpack.c.bf16 %v432, %v431
    %v436 = vpack.c.bf16 %v434, %v433
    %v437 = vld [vmem:[%s6] sm:$0xf]
    %v438 = vld [vmem:[%s6 + $0x4] sm:$0xf]
    %v441 = vunpack.c.l.b16 %v437
    %v442 = vunpack.c.l.b16 %v438
    %v443 = vpack.c.b16 %v442, %v441
    %v446 = vsel %vm88, %v435, 0
    %v449 = vsel %vm88, %v436, 0
    %451 = vmatprep.subr.bf16.mxu0 0
    %452 = vmatpush1.bf16.msra.mxu0 0
    %453 = vmatprep.subr.bf16.mxu0 0
    %454 = vmatpush1.bf16.msra.mxu0 0
    %455 = vmatprep.subr.bf16.mxu0 0
    %456 = vmatpush1.bf16.msra.mxu0 0
    %457 = vmatprep.subr.bf16.mxu0 0
    %458 = vmatpush1.bf16.msra.mxu0 0
    %459 = vmatprep.subr.bf16.mxu0 0
    %460 = vmatpush1.bf16.msra.mxu0 0
    %461 = vmatprep.subr.bf16.mxu0 0
    %462 = vmatpush1.bf16.msra.mxu0 0
    %463 = vmatprep.subr.bf16.mxu0 0
    %464 = vmatpush1.bf16.msra.mxu0 0
    %465 = vmatprep.subr.bf16.mxu0 0
    %466 = vmatpush1.bf16.msra.mxu0 %v443
    %467 = vmatprep.subr.bf16.mxu0 0
    %468 = vmatpush2.bf16.msra.mxu0 0
    %469 = vmatprep.subr.bf16.mxu0 0
    %470 = vmatpush2.bf16.msra.mxu0 0
    %471 = vmatprep.subr.bf16.mxu0 0
    %472 = vmatpush2.bf16.msra.mxu0 0
    %473 = vmatprep.subr.bf16.mxu0 0
    %474 = vmatpush2.bf16.msra.mxu0 0
    %475 = vmatprep.subr.bf16.mxu0 0
    %476 = vmatpush2.bf16.msra.mxu0 0
    %477 = vmatprep.subr.bf16.mxu0 0
    %478 = vmatpush2.bf16.msra.mxu0 0
    %479 = vmatprep.subr.bf16.mxu0 0
    %480 = vmatpush2.bf16.msra.mxu0 0
    %481 = vmatprep.subr.bf16.mxu0 0
    %482 = vmatpush2.bf16.msra.mxu0 0
    %483 = vmatprep.mubr.bf16.mxu0 0
    %484 = vmatmul.mubr.bf16.gmra.mxu0 %v446
    %v485 = vpop.f32.mrf.mxu0
    %v486 = vadd.f32 0.0, %v485
    %v487 = vpop.f32.mrf.mxu0
    %v488 = vpop.f32.mrf.mxu0
    %v489 = vadd.f32 0.0, %v488
    %v490 = vpop.f32.mrf.mxu0
    %491 = vmatprep.mubr.bf16.mxu0 0
    %492 = vmatmul.mubr.bf16.gmra.mxu0 %v449
    %v493 = vpop.f32.mrf.mxu0
    %v494 = vadd.f32 0.0, %v493
    %v495 = vpop.f32.mrf.mxu0
    %v496 = vpop.f32.mrf.mxu0
    %v497 = vadd.f32 0.0, %v496
    %v498 = vpop.f32.mrf.mxu0
    %499 = vdwg.mxu0
    %v500 = vld [vmem:[%s7] sm:$0x1]
    %v501 = vld [vmem:[%s8] sm:$0xf]
    %v502 = vld [vmem:[%s9] sm:$0xff]
    %v503 = vld [vmem:[#allocation5] sm:$0xf]
    %v504 = vld [vmem:[#allocation5 + $0x4] sm:$0xf]
    %v507 = vunpack.c.l.b16 %v503
    %v508 = vunpack.c.l.b16 %v504
    %v509 = vpack.c.b16 %v508, %v507
    %511 = vxpose.xlu0.c.b16.start [1/8] %v509, 128
    %512 = vxpose.xlu0.c.b16.cont [2/8] 0, 128
    %513 = vxpose.xlu0.c.b16.cont [3/8] 0, 128
    %514 = vxpose.xlu0.c.b16.cont [4/8] 0, 128
    %515 = vxpose.xlu0.c.b16.cont [5/8] 0, 128
    %516 = vxpose.xlu0.c.b16.cont [6/8] 0, 128
    %517 = vxpose.xlu0.c.b16.cont [7/8] 0, 128
    %518 = vxpose.xlu0.c.b16.end [8/8] 0, 128
    %v519 = vpop.trf.xlu0
    %v520 = vpop.trf.xlu0
    %v521 = vpop.trf.xlu0
    %v522 = vpop.trf.xlu0
    %v523 = vpop.trf.xlu0
    %v524 = vpop.trf.xlu0
    %v525 = vpop.trf.xlu0
    %v526 = vpop.trf.xlu0
    %v528 = vsel %vm88, %v519, 0
    %530 = vmatprep.subr.bf16.mxu0 0
    %531 = vmatpush1.bf16.msra.mxu0 0
    %532 = vmatprep.subr.bf16.mxu0 0
    %533 = vmatpush1.bf16.msra.mxu0 0
    %534 = vmatprep.subr.bf16.mxu0 0
    %535 = vmatpush1.bf16.msra.mxu0 0
    %536 = vmatprep.subr.bf16.mxu0 0
    %537 = vmatpush1.bf16.msra.mxu0 0
    %538 = vmatprep.subr.bf16.mxu0 0
    %539 = vmatpush1.bf16.msra.mxu0 0
    %540 = vmatprep.subr.bf16.mxu0 0
    %541 = vmatpush1.bf16.msra.mxu0 0
    %542 = vmatprep.subr.bf16.mxu0 0
    %543 = vmatpush1.bf16.msra.mxu0 0
    %544 = vmatprep.subr.bf16.mxu0 0
    %545 = vmatpush1.bf16.msra.mxu0 1065369472
    %546 = vmatprep.subr.bf16.mxu0 0
    %547 = vmatpush2.bf16.msra.mxu0 0
    %548 = vmatprep.subr.bf16.mxu0 0
    %549 = vmatpush2.bf16.msra.mxu0 0
    %550 = vmatprep.subr.bf16.mxu0 0
    %551 = vmatpush2.bf16.msra.mxu0 0
    %552 = vmatprep.subr.bf16.mxu0 0
    %553 = vmatpush2.bf16.msra.mxu0 0
    %554 = vmatprep.subr.bf16.mxu0 0
    %555 = vmatpush2.bf16.msra.mxu0 0
    %556 = vmatprep.subr.bf16.mxu0 0
    %557 = vmatpush2.bf16.msra.mxu0 0
    %558 = vmatprep.subr.bf16.mxu0 0
    %559 = vmatpush2.bf16.msra.mxu0 0
    %560 = vmatprep.subr.bf16.mxu0 0
    %561 = vmatpush2.bf16.msra.mxu0 0
    %562 = vmatprep.mubr.bf16.mxu0 0
    %563 = vmatmul.mubr.bf16.gmra.mxu0 %v528
    %v564 = vpop.f32.mrf.mxu0
    %v565 = vadd.f32 1.0, %v564
    %v566 = vpop.f32.mrf.mxu0
    %v567 = vpop.f32.mrf.mxu0
    %v568 = vadd.f32 1.0, %v567
    %v569 = vpop.f32.mrf.mxu0
    %570 = vdwg.mxu0
    %v571 = vrsqrt.pop %v565
    %v572 = vrsqrt.pop %v568
    %574 = vset.pattern.permute.xlu0 0
    %575 = vperm.xlu0 %574, %v571
    %v576 = vpop.permute.xlu0 %575
    %579 = vset.pattern.permute.xlu0 0
    %580 = vperm.xlu0 %579, %v572
    %v581 = vpop.permute.xlu0 %580
    %v583 = vmul.f32 %v486, %v576
    %v584 = vmul.f32 %v489, %v581
    %v585 = vpack.c.bf16 %v584, %v583
    %586 = vmatprep.subr.bf16.mxu0 0
    %587 = vmatpush1.bf16.msra.mxu0 0
    %588 = vmatprep.subr.bf16.mxu0 0
    %589 = vmatpush1.bf16.msra.mxu0 0
    %590 = vmatprep.subr.bf16.mxu0 0
    %591 = vmatpush1.bf16.msra.mxu0 0
    %592 = vmatprep.subr.bf16.mxu0 0
    %593 = vmatpush1.bf16.msra.mxu0 0
    %594 = vmatprep.subr.bf16.mxu0 0
    %595 = vmatpush1.bf16.msra.mxu0 0
    %596 = vmatprep.subr.bf16.mxu0 0
    %597 = vmatpush1.bf16.msra.mxu0 0
    %598 = vmatprep.subr.bf16.mxu0 0
    %599 = vmatpush1.bf16.msra.mxu0 0
    %600 = vmatprep.subr.bf16.mxu0 0
    %601 = vmatpush1.bf16.msra.mxu0 %v585
    %602 = vmatprep.subr.bf16.mxu0 0
    %603 = vmatpush2.bf16.msra.mxu0 0
    %604 = vmatprep.subr.bf16.mxu0 0
    %605 = vmatpush2.bf16.msra.mxu0 0
    %606 = vmatprep.subr.bf16.mxu0 0
    %607 = vmatpush2.bf16.msra.mxu0 0
    %608 = vmatprep.subr.bf16.mxu0 0
    %609 = vmatpush2.bf16.msra.mxu0 0
    %610 = vmatprep.subr.bf16.mxu0 0
    %611 = vmatpush2.bf16.msra.mxu0 0
    %612 = vmatprep.subr.bf16.mxu0 0
    %613 = vmatpush2.bf16.msra.mxu0 0
    %614 = vmatprep.subr.bf16.mxu0 0
    %615 = vmatpush2.bf16.msra.mxu0 0
    %616 = vmatprep.subr.bf16.mxu0 0
    %617 = vmatpush2.bf16.msra.mxu0 0
    %618 = vmatprep.mubr.bf16.mxu0 0
    %619 = vmatmul.mubr.bf16.gmra.mxu0 %v528
    %v620 = vpop.f32.mrf.mxu0
    %v621 = vadd.f32 %v583, %v620
    %v622 = vpop.f32.mrf.mxu0
    %v623 = vpop.f32.mrf.mxu0
    %v624 = vadd.f32 %v584, %v623
    %v625 = vpop.f32.mrf.mxu0
    %626 = vdwg.mxu0
    %v627 = vmul.f32 %v621, %v576
    %v628 = vmul.f32 %v624, %v581
    %v630 = vlaneseq
    %v631 = vshrl.u32 %v630, 7
    %v632 = vsub.s32 0, %v631
    %v633 = vrot.slane %v500, %v632
    %v635 = vadd.f32 %v627, %v633
    %v636 = vadd.f32 %v628, %v633
    %vm637 = vcmp.gt.f32.partialorder %v635, 0.0
    %vm638 = vcmp.gt.f32.partialorder %v636, 0.0
    %v639 = vmul.f32 %v635, 1.442695
    %v640 = vpow.pop %v639
    %v641 = vmul.f32 %v636, 1.442695
    %v642 = vpow.pop %v641
    %v643 = vsub.f32 %v640, 1.0
    %v644 = vsub.f32 %v642, 1.0
    %v645 = vmul.f32 %v643, 1.6732632
    %v646 = vmul.f32 %v644, 1.6732632
    %v647 = vsel %vm637, %v635, %v645
    %v648 = vsel %vm638, %v636, %v646
    %v649 = vmul.f32 %v647, 1.050701
    %v650 = vmul.f32 %v648, 1.050701
    %v651 = vpack.c.bf16 %v650, %v649
    %653 = vset.pattern.permute.xlu0 0
    %654 = vperm.xlu0 %653, %v502
    %v655 = vpop.permute.xlu0 %654
    %657 = vmatprep.subr.bf16.mxu0 0
    %658 = vmatpush1.bf16.xpose.msra.mxu0 0
    %659 = vmatprep.subr.bf16.mxu0 0
    %660 = vmatpush1.bf16.xpose.msra.mxu0 0
    %661 = vmatprep.subr.bf16.mxu0 0
    %662 = vmatpush1.bf16.xpose.msra.mxu0 0
    %663 = vmatprep.subr.bf16.mxu0 0
    %664 = vmatpush1.bf16.xpose.msra.mxu0 0
    %665 = vmatprep.subr.bf16.mxu0 0
    %666 = vmatpush1.bf16.xpose.msra.mxu0 0
    %667 = vmatprep.subr.bf16.mxu0 0
    %668 = vmatpush1.bf16.xpose.msra.mxu0 0
    %669 = vmatprep.subr.bf16.mxu0 0
    %670 = vmatpush1.bf16.xpose.msra.mxu0 0
    %671 = vmatprep.subr.bf16.mxu0 0
    %672 = vmatpush1.bf16.xpose.msra.mxu0 %v651
    %673 = vmatprep.subr.bf16.mxu0 0
    %674 = vmatpush2.bf16.xpose.msra.mxu0 0
    %675 = vmatprep.subr.bf16.mxu0 0
    %676 = vmatpush2.bf16.xpose.msra.mxu0 0
    %677 = vmatprep.subr.bf16.mxu0 0
    %678 = vmatpush2.bf16.xpose.msra.mxu0 0
    %679 = vmatprep.subr.bf16.mxu0 0
    %680 = vmatpush2.bf16.xpose.msra.mxu0 0
    %681 = vmatprep.subr.bf16.mxu0 0
    %682 = vmatpush2.bf16.xpose.msra.mxu0 0
    %683 = vmatprep.subr.bf16.mxu0 0
    %684 = vmatpush2.bf16.xpose.msra.mxu0 0
    %685 = vmatprep.subr.bf16.mxu0 0
    %686 = vmatpush2.bf16.xpose.msra.mxu0 0
    %687 = vmatprep.subr.bf16.mxu0 0
    %688 = vmatpush2.bf16.xpose.msra.mxu0 0
    %689 = vmatprep.mubr.bf16.mxu0 0
    %690 = vmatmul.mubr.bf16.gmra.mxu0 %v501
    %v691 = vpop.f32.mrf.mxu0
    %v692 = vadd.f32 %v655, %v691
    %v693 = vpop.f32.mrf.mxu0
    %v694 = vpop.f32.mrf.mxu0
    %v695 = vpop.f32.mrf.mxu0
    %696 = vdwg.mxu0
    %v697 = vsel %vm88, %v692, -inf
    %v698 = vrot.slane %v697, 4
    %v699 = vmax.f32 %v697, %v698
    %v700 = vrot.slane %v699, 2
    %v701 = vmax.f32 %v699, %v700
    %v702 = vrot.slane %v701, 1
    %v703 = vmax.f32 %v701, %v702
    %v704 = vsub.f32 %v692, %v703
    %v705 = vmul.f32 %v704, 1.442695
    %v706 = vpow.pop %v705
    %v707 = vsel %vm88, %v706, 0.0
    %v708 = vrot.slane %v707, 4
    %v709 = vadd.f32 %v707, %v708
    %v710 = vrot.slane %v709, 2
    %v711 = vadd.f32 %v709, %v710
    %v712 = vrot.slane %v711, 1
    %v713 = vadd.f32 %v711, %v712
    %v714 = vrcp.pop %v713
    %v715 = vmul.f32 %v706, %v714
    %v716 = vlaneseq
    %v717 = vshrl.u32 %v716, 7
    %v718 = vsub.s32 0, %v717
    %v719 = vrot.slane %v74, %v718
    %v721 = vmul.f32 %v715, %v719
    %v722 = vpack.c.bf16 %v721, %v721
    %v724 = vsel %vm88, %v722, 0
    %726 = vmatprep.subr.bf16.mxu0 0
    %727 = vmatpush1.bf16.msra.mxu0 0
    %728 = vmatprep.subr.bf16.mxu0 0
    %729 = vmatpush1.bf16.msra.mxu0 0
    %730 = vmatprep.subr.bf16.mxu0 0
    %731 = vmatpush1.bf16.msra.mxu0 0
    %732 = vmatprep.subr.bf16.mxu0 0
    %733 = vmatpush1.bf16.msra.mxu0 0
    %734 = vmatprep.subr.bf16.mxu0 0
    %735 = vmatpush1.bf16.msra.mxu0 0
    %736 = vmatprep.subr.bf16.mxu0 0
    %737 = vmatpush1.bf16.msra.mxu0 0
    %738 = vmatprep.subr.bf16.mxu0 0
    %739 = vmatpush1.bf16.msra.mxu0 0
    %740 = vmatprep.subr.bf16.mxu0 0
    %741 = vmatpush1.bf16.msra.mxu0 %v651
    %742 = vmatprep.subr.bf16.mxu0 0
    %743 = vmatpush2.bf16.msra.mxu0 0
    %744 = vmatprep.subr.bf16.mxu0 0
    %745 = vmatpush2.bf16.msra.mxu0 0
    %746 = vmatprep.subr.bf16.mxu0 0
    %747 = vmatpush2.bf16.msra.mxu0 0
    %748 = vmatprep.subr.bf16.mxu0 0
    %749 = vmatpush2.bf16.msra.mxu0 0
    %750 = vmatprep.subr.bf16.mxu0 0
    %751 = vmatpush2.bf16.msra.mxu0 0
    %752 = vmatprep.subr.bf16.mxu0 0
    %753 = vmatpush2.bf16.msra.mxu0 0
    %754 = vmatprep.subr.bf16.mxu0 0
    %755 = vmatpush2.bf16.msra.mxu0 0
    %756 = vmatprep.subr.bf16.mxu0 0
    %757 = vmatpush2.bf16.msra.mxu0 0
    %758 = vmatprep.mubr.bf16.mxu0 0
    %759 = vmatmul.mubr.bf16.gmra.mxu0 %v724
    %v760 = vpop.f32.mrf.mxu0
    %v761 = vadd.f32 0.0, %v760
    %v762 = vpop.f32.mrf.mxu0
    %v763 = vpop.f32.mrf.mxu0
    %v764 = vpop.f32.mrf.mxu0
    %765 = vdwg.mxu0
    %vm766 = vcmp.gt.f32.partialorder %v761, 0.0
    %v767 = vmul.f32 %v761, 1.442695
    %v768 = vpow.pop %v767
    %v769 = vsub.f32 %v768, 1.0
    %v770 = vmul.f32 %v769, 1.6732632
    %v771 = vsel %vm766, %v761, %v770
    %v772 = vmul.f32 %v771, 1.050701
    %773 = vmatprep.subr.bf16.mxu0 0
    %774 = vmatpush1.bf16.msra.mxu0 0
    %775 = vmatprep.subr.bf16.mxu0 0
    %776 = vmatpush1.bf16.msra.mxu0 0
    %777 = vmatprep.subr.bf16.mxu0 0
    %778 = vmatpush1.bf16.msra.mxu0 0
    %779 = vmatprep.subr.bf16.mxu0 0
    %780 = vmatpush1.bf16.msra.mxu0 0
    %781 = vmatprep.subr.bf16.mxu0 0
    %782 = vmatpush1.bf16.msra.mxu0 0
    %783 = vmatprep.subr.bf16.mxu0 0
    %784 = vmatpush1.bf16.msra.mxu0 0
    %785 = vmatprep.subr.bf16.mxu0 0
    %786 = vmatpush1.bf16.msra.mxu0 0
    %787 = vmatprep.subr.bf16.mxu0 0
    %788 = vmatpush1.bf16.msra.mxu0 %v509
    %789 = vmatprep.subr.bf16.mxu0 0
    %790 = vmatpush2.bf16.msra.mxu0 0
    %791 = vmatprep.subr.bf16.mxu0 0
    %792 = vmatpush2.bf16.msra.mxu0 0
    %793 = vmatprep.subr.bf16.mxu0 0
    %794 = vmatpush2.bf16.msra.mxu0 0
    %795 = vmatprep.subr.bf16.mxu0 0
    %796 = vmatpush2.bf16.msra.mxu0 0
    %797 = vmatprep.subr.bf16.mxu0 0
    %798 = vmatpush2.bf16.msra.mxu0 0
    %799 = vmatprep.subr.bf16.mxu0 0
    %800 = vmatpush2.bf16.msra.mxu0 0
    %801 = vmatprep.subr.bf16.mxu0 0
    %802 = vmatpush2.bf16.msra.mxu0 0
    %803 = vmatprep.subr.bf16.mxu0 0
    %804 = vmatpush2.bf16.msra.mxu0 0
    %805 = vmatprep.mubr.bf16.mxu0 0
    %806 = vmatmul.mubr.bf16.gmra.mxu0 %v724
    %v807 = vpop.f32.mrf.mxu0
    %v808 = vadd.f32 0.0, %v807
    %v809 = vpop.f32.mrf.mxu0
    %v810 = vpop.f32.mrf.mxu0
    %v811 = vpop.f32.mrf.mxu0
    %812 = vdwg.mxu0
    %v813 = vmul.f32 %v808, %v721
    %v814 = vsel %vm88, %v813, 0.0
    %815 = vadd.xlane.f32.xlu0 %v814
    %v816 = vpop.xlane.xlu0 %815
    %v817 = vrot.slane %v816, 4
    %v818 = vadd.f32 %v816, %v817
    %v819 = vrot.slane %v818, 2
    %v820 = vadd.f32 %v818, %v819
    %v821 = vrot.slane %v820, 1
    %v822 = vadd.f32 %v820, %v821
    %v823 = vsel %vm88, %v808, 0.0
    %824 = vadd.xlane.f32.xlu0 %v823
    %v825 = vpop.xlane.xlu0 %824
    %v826 = vadd.f32 %v565, 0.0
    %v827 = vadd.f32 %v568, 0.0
    %vm828 = vcmask 7168
    %v829 = vsel %vm828, %v826, 0.0
    %v830 = vsel %vm828, %v827, 0.0
    %v831 = vadd.f32 %v829, %v830
    %v832 = vrot.slane %v831, 4
    %v833 = vadd.f32 %v831, %v832
    %v834 = vrot.slane %v833, 2
    %v835 = vadd.f32 %v833, %v834
    %v836 = vrot.slane %v835, 1
    %v837 = vadd.f32 %v835, %v836
    %v838 = vsub.f32 %v837, 16.0
    %v839 = vmax.f32 %v838, 1e-12
    %v840 = vmul.f32 %v825, %v825
    %v841 = vadd.f32 %v840, 0.0
    %v842 = vrot.slane %v841, 4
    %v843 = vadd.f32 %v841, %v842
    %v844 = vrot.slane %v843, 2
    %v845 = vadd.f32 %v843, %v844
    %v846 = vrot.slane %v845, 1
    %v847 = vadd.f32 %v845, %v846
    %v848 = vrcp.pop %v839
    %v849 = vmul.f32 %v847, %v848
    %v850 = vsub.f32 %v822, %v849
    %v851 = vsub.f32 0.0, %v850
    %v852 = vmul.f32 %v851, %v848
    %853 = vmatprep.subr.bf16.mxu0 0
    %854 = vmatpush1.bf16.xpose.msra.mxu0 0
    %855 = vmatprep.subr.bf16.mxu0 0
    %856 = vmatpush1.bf16.xpose.msra.mxu0 0
    %857 = vmatprep.subr.bf16.mxu0 0
    %858 = vmatpush1.bf16.xpose.msra.mxu0 0
    %859 = vmatprep.subr.bf16.mxu0 0
    %860 = vmatpush1.bf16.xpose.msra.mxu0 0
    %861 = vmatprep.subr.bf16.mxu0 0
    %862 = vmatpush1.bf16.xpose.msra.mxu0 0
    %863 = vmatprep.subr.bf16.mxu0 0
    %864 = vmatpush1.bf16.xpose.msra.mxu0 0
    %865 = vmatprep.subr.bf16.mxu0 0
    %866 = vmatpush1.bf16.xpose.msra.mxu0 0
    %867 = vmatprep.subr.bf16.mxu0 0
    %868 = vmatpush1.bf16.xpose.msra.mxu0 %v724
    %869 = vmatprep.subr.bf16.mxu0 0
    %870 = vmatpush2.bf16.xpose.msra.mxu0 0
    %871 = vmatprep.subr.bf16.mxu0 0
    %872 = vmatpush2.bf16.xpose.msra.mxu0 0
    %873 = vmatprep.subr.bf16.mxu0 0
    %874 = vmatpush2.bf16.xpose.msra.mxu0 0
    %875 = vmatprep.subr.bf16.mxu0 0
    %876 = vmatpush2.bf16.xpose.msra.mxu0 0
    %877 = vmatprep.subr.bf16.mxu0 0
    %878 = vmatpush2.bf16.xpose.msra.mxu0 0
    %879 = vmatprep.subr.bf16.mxu0 0
    %880 = vmatpush2.bf16.xpose.msra.mxu0 0
    %881 = vmatprep.subr.bf16.mxu0 0
    %882 = vmatpush2.bf16.xpose.msra.mxu0 0
    %883 = vmatprep.subr.bf16.mxu0 0
    %884 = vmatpush2.bf16.xpose.msra.mxu0 0
    %885 = vmatprep.mubr.bf16.mxu0 0
    %886 = vmatmul.mubr.bf16.gmra.mxu0 %v724
    %v887 = vpop.f32.mrf.mxu0
    %v888 = vadd.f32 0.0, %v887
    %v889 = vpop.f32.mrf.mxu0
    %v890 = vpop.f32.mrf.mxu0
    %v891 = vpop.f32.mrf.mxu0
    %892 = vdwg.mxu0
    %v893 = vmul.f32 %v888, %v888
    %vm894 = vcmask 64512
    %v895 = vsel %vm894, %v893, 0.0
    %896 = vadd.xlane.f32.xlu0 %v895
    %v897 = vpop.xlane.xlu0 %896
    %v898 = vrot.slane %v897, 4
    %v899 = vadd.f32 %v897, %v898
    %v900 = vrot.slane %v899, 2
    %v901 = vadd.f32 %v899, %v900
    %v902 = vrot.slane %v901, 1
    %v903 = vadd.f32 %v901, %v902
    %v904 = vrsqrt.pop %v903
    %v905 = vmul.f32 %v903, %v904
    %vm906 = vcmp.eq.f32.partialorder %v903, inf
    %v907 = vsel %vm906, %v903, %v905
    %vm908 = vcmp.eq.f32.partialorder %v903, 0.0
    %v909 = vand.u32 %v903, 2147483648
    %v910 = vsel %vm908, %v909, %v907
    %v911 = vmax.f32 %v910, 1e-12
    %v912 = vmul.f32 %v721, %v721
    %v913 = vsel %vm88, %v912, 0.0
    %914 = vadd.xlane.f32.xlu0 %v913
    %v915 = vpop.xlane.xlu0 %914
    %v916 = vrot.slane %v915, 4
    %v917 = vadd.f32 %v915, %v916
    %v918 = vrot.slane %v917, 2
    %v919 = vadd.f32 %v917, %v918
    %v920 = vrot.slane %v919, 1
    %v921 = vadd.f32 %v919, %v920
    %v922 = vmul.f32 %v921, 2.0
    %v923 = vmul.f32 %v922, 0.35355338
    %v924 = vrcp.pop %v911
    %v925 = vmul.f32 %v923, %v924
    %v926 = vsub.f32 2.0, %v925
    %v927 = vmax.f32 %v926, 0.0
    %v928 = vrsqrt.pop %v927
    %v929 = vmul.f32 %v927, %v928
    %vm930 = vcmp.eq.f32.partialorder %v927, inf
    %v931 = vsel %vm930, %v927, %v929
    %vm932 = vcmp.eq.f32.partialorder %v927, 0.0
    %v933 = vand.u32 %v927, 2147483648
    %v934 = vsel %vm932, %v933, %v931
    %v935 = vsel %vm88, %v721, 0.0
    %936 = vadd.xlane.f32.xlu0 %v935
    %v937 = vpop.xlane.xlu0 %936
    %v938 = vmul.f32 %v937, %v937
    %v939 = vadd.f32 %v938, 0.0
    %v940 = vrot.slane %v939, 4
    %v941 = vadd.f32 %v939, %v940
    %v942 = vrot.slane %v941, 2
    %v943 = vadd.f32 %v941, %v942
    %v944 = vrot.slane %v943, 1
    %v945 = vadd.f32 %v943, %v944
    %v946 = vrsqrt.pop %v945
    %v947 = vmul.f32 %v945, %v946
    %vm948 = vcmp.eq.f32.partialorder %v945, inf
    %v949 = vsel %vm948, %v945, %v947
    %vm950 = vcmp.eq.f32.partialorder %v945, 0.0
    %v951 = vand.u32 %v945, 2147483648
    %v952 = vsel %vm950, %v951, %v949
    %953 = vmax.xlane.f32.xlu0 %v772
    %v954 = vpop.xlane.xlu0 %953
    %v955 = vsub.f32 %v772, %v954
    %v956 = vmul.f32 %v955, 1.442695
    %v957 = vpow.pop %v956
    %958 = vadd.xlane.f32.xlu0 %v957
    %v959 = vpop.xlane.xlu0 %958
    %v960 = vlog2.pop %v959
    %v961 = vmul.f32 %v960, 0.6931472
    %v962 = vsub.f32 %v955, %v961
    %963 = vst [vmem:[#allocation7] sm:$0xff] %v962
    %964 = vst.msk [vmem:[#allocation8] sm:$0xff] %vm88, %v721
    %v965 = vsel %vm828, %v852, %v934
    %vm966 = vcmask 15360
    %v967 = vsel %vm966, %v965, %v952
    %vm968 = vcmask 23552
    %v969 = vsel %vm968, %v967, %v79
    %vm970 = vcmask 24576
    %971 = vst.msk [vmem:[#allocation10] sm:$0x1] %vm970, %v969
    %s972 = scalar_lea.vmem [#allocation5], 8
    %v973 = vld [vmem:[%s972] sm:$0xf]
    %v974 = vld [vmem:[%s972 + $0x4] sm:$0xf]
    %v977 = vunpack.c.l.b16 %v973
    %v978 = vunpack.c.l.b16 %v974
    %v979 = vpack.c.b16 %v978, %v977
    %981 = vxpose.xlu0.c.b16.start [1/8] %v979, 128
    %982 = vxpose.xlu0.c.b16.cont [2/8] 0, 128
    %983 = vxpose.xlu0.c.b16.cont [3/8] 0, 128
    %984 = vxpose.xlu0.c.b16.cont [4/8] 0, 128
    %985 = vxpose.xlu0.c.b16.cont [5/8] 0, 128
    %986 = vxpose.xlu0.c.b16.cont [6/8] 0, 128
    %987 = vxpose.xlu0.c.b16.cont [7/8] 0, 128
    %988 = vxpose.xlu0.c.b16.end [8/8] 0, 128
    %v989 = vpop.trf.xlu0
    %v990 = vpop.trf.xlu0
    %v991 = vpop.trf.xlu0
    %v992 = vpop.trf.xlu0
    %v993 = vpop.trf.xlu0
    %v994 = vpop.trf.xlu0
    %v995 = vpop.trf.xlu0
    %v996 = vpop.trf.xlu0
    %v998 = vsel %vm88, %v989, 0
    %1000 = vmatprep.subr.bf16.mxu0 0
    %1001 = vmatpush1.bf16.msra.mxu0 0
    %1002 = vmatprep.subr.bf16.mxu0 0
    %1003 = vmatpush1.bf16.msra.mxu0 0
    %1004 = vmatprep.subr.bf16.mxu0 0
    %1005 = vmatpush1.bf16.msra.mxu0 0
    %1006 = vmatprep.subr.bf16.mxu0 0
    %1007 = vmatpush1.bf16.msra.mxu0 0
    %1008 = vmatprep.subr.bf16.mxu0 0
    %1009 = vmatpush1.bf16.msra.mxu0 0
    %1010 = vmatprep.subr.bf16.mxu0 0
    %1011 = vmatpush1.bf16.msra.mxu0 0
    %1012 = vmatprep.subr.bf16.mxu0 0
    %1013 = vmatpush1.bf16.msra.mxu0 0
    %1014 = vmatprep.subr.bf16.mxu0 0
    %1015 = vmatpush1.bf16.msra.mxu0 1065369472
    %1016 = vmatprep.subr.bf16.mxu0 0
    %1017 = vmatpush2.bf16.msra.mxu0 0
    %1018 = vmatprep.subr.bf16.mxu0 0
    %1019 = vmatpush2.bf16.msra.mxu0 0
    %1020 = vmatprep.subr.bf16.mxu0 0
    %1021 = vmatpush2.bf16.msra.mxu0 0
    %1022 = vmatprep.subr.bf16.mxu0 0
    %1023 = vmatpush2.bf16.msra.mxu0 0
    %1024 = vmatprep.subr.bf16.mxu0 0
    %1025 = vmatpush2.bf16.msra.mxu0 0
    %1026 = vmatprep.subr.bf16.mxu0 0
    %1027 = vmatpush2.bf16.msra.mxu0 0
    %1028 = vmatprep.subr.bf16.mxu0 0
    %1029 = vmatpush2.bf16.msra.mxu0 0
    %1030 = vmatprep.subr.bf16.mxu0 0
    %1031 = vmatpush2.bf16.msra.mxu0 0
    %1032 = vmatprep.mubr.bf16.mxu0 0
    %1033 = vmatmul.mubr.bf16.gmra.mxu0 %v998
    %v1034 = vpop.f32.mrf.mxu0
    %v1035 = vadd.f32 1.0, %v1034
    %v1036 = vpop.f32.mrf.mxu0
    %v1037 = vpop.f32.mrf.mxu0
    %v1038 = vadd.f32 1.0, %v1037
    %v1039 = vpop.f32.mrf.mxu0
    %1040 = vdwg.mxu0
    %v1041 = vrsqrt.pop %v1035
    %v1042 = vrsqrt.pop %v1038
    %1044 = vset.pattern.permute.xlu0 0
    %1045 = vperm.xlu0 %1044, %v1041
    %v1046 = vpop.permute.xlu0 %1045
    %1049 = vset.pattern.permute.xlu0 0
    %1050 = vperm.xlu0 %1049, %v1042
    %v1051 = vpop.permute.xlu0 %1050
    %v1053 = vmul.f32 %v494, %v1046
    %v1054 = vmul.f32 %v497, %v1051
    %v1055 = vpack.c.bf16 %v1054, %v1053
    %1056 = vmatprep.subr.bf16.mxu0 0
    %1057 = vmatpush1.bf16.msra.mxu0 0
    %1058 = vmatprep.subr.bf16.mxu0 0
    %1059 = vmatpush1.bf16.msra.mxu0 0
    %1060 = vmatprep.subr.bf16.mxu0 0
    %1061 = vmatpush1.bf16.msra.mxu0 0
    %1062 = vmatprep.subr.bf16.mxu0 0
    %1063 = vmatpush1.bf16.msra.mxu0 0
    %1064 = vmatprep.subr.bf16.mxu0 0
    %1065 = vmatpush1.bf16.msra.mxu0 0
    %1066 = vmatprep.subr.bf16.mxu0 0
    %1067 = vmatpush1.bf16.msra.mxu0 0
    %1068 = vmatprep.subr.bf16.mxu0 0
    %1069 = vmatpush1.bf16.msra.mxu0 0
    %1070 = vmatprep.subr.bf16.mxu0 0
    %1071 = vmatpush1.bf16.msra.mxu0 %v1055
    %1072 = vmatprep.subr.bf16.mxu0 0
    %1073 = vmatpush2.bf16.msra.mxu0 0
    %1074 = vmatprep.subr.bf16.mxu0 0
    %1075 = vmatpush2.bf16.msra.mxu0 0
    %1076 = vmatprep.subr.bf16.mxu0 0
    %1077 = vmatpush2.bf16.msra.mxu0 0
    %1078 = vmatprep.subr.bf16.mxu0 0
    %1079 = vmatpush2.bf16.msra.mxu0 0
    %1080 = vmatprep.subr.bf16.mxu0 0
    %1081 = vmatpush2.bf16.msra.mxu0 0
    %1082 = vmatprep.subr.bf16.mxu0 0
    %1083 = vmatpush2.bf16.msra.mxu0 0
    %1084 = vmatprep.subr.bf16.mxu0 0
    %1085 = vmatpush2.bf16.msra.mxu0 0
    %1086 = vmatprep.subr.bf16.mxu0 0
    %1087 = vmatpush2.bf16.msra.mxu0 0
    %1088 = vmatprep.mubr.bf16.mxu0 0
    %1089 = vmatmul.mubr.bf16.gmra.mxu0 %v998
    %v1090 = vpop.f32.mrf.mxu0
    %v1091 = vadd.f32 %v1053, %v1090
    %v1092 = vpop.f32.mrf.mxu0
    %v1093 = vpop.f32.mrf.mxu0
    %v1094 = vadd.f32 %v1054, %v1093
    %v1095 = vpop.f32.mrf.mxu0
    %1096 = vdwg.mxu0
    %v1097 = vmul.f32 %v1091, %v1046
    %v1098 = vmul.f32 %v1094, %v1051
    %v1099 = vadd.f32 %v1097, %v633
    %v1100 = vadd.f32 %v1098, %v633
    %vm1101 = vcmp.gt.f32.partialorder %v1099, 0.0
    %vm1102 = vcmp.gt.f32.partialorder %v1100, 0.0
    %v1103 = vmul.f32 %v1099, 1.442695
    %v1104 = vpow.pop %v1103
    %v1105 = vmul.f32 %v1100, 1.442695
    %v1106 = vpow.pop %v1105
    %v1107 = vsub.f32 %v1104, 1.0
    %v1108 = vsub.f32 %v1106, 1.0
    %v1109 = vmul.f32 %v1107, 1.6732632
    %v1110 = vmul.f32 %v1108, 1.6732632
    %v1111 = vsel %vm1101, %v1099, %v1109
    %v1112 = vsel %vm1102, %v1100, %v1110
    %v1113 = vmul.f32 %v1111, 1.050701
    %v1114 = vmul.f32 %v1112, 1.050701
    %v1115 = vpack.c.bf16 %v1114, %v1113
    %1116 = vmatprep.subr.bf16.mxu0 0
    %1117 = vmatpush1.bf16.xpose.msra.mxu0 0
    %1118 = vmatprep.subr.bf16.mxu0 0
    %1119 = vmatpush1.bf16.xpose.msra.mxu0 0
    %1120 = vmatprep.subr.bf16.mxu0 0
    %1121 = vmatpush1.bf16.xpose.msra.mxu0 0
    %1122 = vmatprep.subr.bf16.mxu0 0
    %1123 = vmatpush1.bf16.xpose.msra.mxu0 0
    %1124 = vmatprep.subr.bf16.mxu0 0
    %1125 = vmatpush1.bf16.xpose.msra.mxu0 0
    %1126 = vmatprep.subr.bf16.mxu0 0
    %1127 = vmatpush1.bf16.xpose.msra.mxu0 0
    %1128 = vmatprep.subr.bf16.mxu0 0
    %1129 = vmatpush1.bf16.xpose.msra.mxu0 0
    %1130 = vmatprep.subr.bf16.mxu0 0
    %1131 = vmatpush1.bf16.xpose.msra.mxu0 %v1115
    %1132 = vmatprep.subr.bf16.mxu0 0
    %1133 = vmatpush2.bf16.xpose.msra.mxu0 0
    %1134 = vmatprep.subr.bf16.mxu0 0
    %1135 = vmatpush2.bf16.xpose.msra.mxu0 0
    %1136 = vmatprep.subr.bf16.mxu0 0
    %1137 = vmatpush2.bf16.xpose.msra.mxu0 0
    %1138 = vmatprep.subr.bf16.mxu0 0
    %1139 = vmatpush2.bf16.xpose.msra.mxu0 0
    %1140 = vmatprep.subr.bf16.mxu0 0
    %1141 = vmatpush2.bf16.xpose.msra.mxu0 0
    %1142 = vmatprep.subr.bf16.mxu0 0
    %1143 = vmatpush2.bf16.xpose.msra.mxu0 0
    %1144 = vmatprep.subr.bf16.mxu0 0
    %1145 = vmatpush2.bf16.xpose.msra.mxu0 0
    %1146 = vmatprep.subr.bf16.mxu0 0
    %1147 = vmatpush2.bf16.xpose.msra.mxu0 0
    %1148 = vmatprep.mubr.bf16.mxu0 0
    %1149 = vmatmul.mubr.bf16.gmra.mxu0 %v501
    %v1150 = vpop.f32.mrf.mxu0
    %v1151 = vadd.f32 %v655, %v1150
    %v1152 = vpop.f32.mrf.mxu0
    %v1153 = vpop.f32.mrf.mxu0
    %v1154 = vpop.f32.mrf.mxu0
    %1155 = vdwg.mxu0
    %v1156 = vsel %vm88, %v1151, -inf
    %v1157 = vrot.slane %v1156, 4
    %v1158 = vmax.f32 %v1156, %v1157
    %v1159 = vrot.slane %v1158, 2
    %v1160 = vmax.f32 %v1158, %v1159
    %v1161 = vrot.slane %v1160, 1
    %v1162 = vmax.f32 %v1160, %v1161
    %v1163 = vsub.f32 %v1151, %v1162
    %v1164 = vmul.f32 %v1163, 1.442695
    %v1165 = vpow.pop %v1164
    %v1166 = vsel %vm88, %v1165, 0.0
    %v1167 = vrot.slane %v1166, 4
    %v1168 = vadd.f32 %v1166, %v1167
    %v1169 = vrot.slane %v1168, 2
    %v1170 = vadd.f32 %v1168, %v1169
    %v1171 = vrot.slane %v1170, 1
    %v1172 = vadd.f32 %v1170, %v1171
    %v1173 = vrcp.pop %v1172
    %v1174 = vmul.f32 %v1165, %v1173
    %v1175 = vlaneseq
    %v1176 = vshrl.u32 %v1175, 7
    %v1177 = vsub.s32 0, %v1176
    %v1178 = vrot.slane %v75, %v1177
    %v1180 = vmul.f32 %v1174, %v1178
    %v1181 = vpack.c.bf16 %v1180, %v1180
    %v1183 = vsel %vm88, %v1181, 0
    %1185 = vmatprep.subr.bf16.mxu0 0
    %1186 = vmatpush1.bf16.msra.mxu0 0
    %1187 = vmatprep.subr.bf16.mxu0 0
    %1188 = vmatpush1.bf16.msra.mxu0 0
    %1189 = vmatprep.subr.bf16.mxu0 0
    %1190 = vmatpush1.bf16.msra.mxu0 0
    %1191 = vmatprep.subr.bf16.mxu0 0
    %1192 = vmatpush1.bf16.msra.mxu0 0
    %1193 = vmatprep.subr.bf16.mxu0 0
    %1194 = vmatpush1.bf16.msra.mxu0 0
    %1195 = vmatprep.subr.bf16.mxu0 0
    %1196 = vmatpush1.bf16.msra.mxu0 0
    %1197 = vmatprep.subr.bf16.mxu0 0
    %1198 = vmatpush1.bf16.msra.mxu0 0
    %1199 = vmatprep.subr.bf16.mxu0 0
    %1200 = vmatpush1.bf16.msra.mxu0 %v1115
    %1201 = vmatprep.subr.bf16.mxu0 0
    %1202 = vmatpush2.bf16.msra.mxu0 0
    %1203 = vmatprep.subr.bf16.mxu0 0
    %1204 = vmatpush2.bf16.msra.mxu0 0
    %1205 = vmatprep.subr.bf16.mxu0 0
    %1206 = vmatpush2.bf16.msra.mxu0 0
    %1207 = vmatprep.subr.bf16.mxu0 0
    %1208 = vmatpush2.bf16.msra.mxu0 0
    %1209 = vmatprep.subr.bf16.mxu0 0
    %1210 = vmatpush2.bf16.msra.mxu0 0
    %1211 = vmatprep.subr.bf16.mxu0 0
    %1212 = vmatpush2.bf16.msra.mxu0 0
    %1213 = vmatprep.subr.bf16.mxu0 0
    %1214 = vmatpush2.bf16.msra.mxu0 0
    %1215 = vmatprep.subr.bf16.mxu0 0
    %1216 = vmatpush2.bf16.msra.mxu0 0
    %1217 = vmatprep.mubr.bf16.mxu0 0
    %1218 = vmatmul.mubr.bf16.gmra.mxu0 %v1183
    %v1219 = vpop.f32.mrf.mxu0
    %v1220 = vadd.f32 0.0, %v1219
    %v1221 = vpop.f32.mrf.mxu0
    %v1222 = vpop.f32.mrf.mxu0
    %v1223 = vpop.f32.mrf.mxu0
    %1224 = vdwg.mxu0
    %vm1225 = vcmp.gt.f32.partialorder %v1220, 0.0
    %v1226 = vmul.f32 %v1220, 1.442695
    %v1227 = vpow.pop %v1226
    %v1228 = vsub.f32 %v1227, 1.0
    %v1229 = vmul.f32 %v1228, 1.6732632
    %v1230 = vsel %vm1225, %v1220, %v1229
    %v1231 = vmul.f32 %v1230, 1.050701
    %1232 = vmatprep.subr.bf16.mxu0 0
    %1233 = vmatpush1.bf16.msra.mxu0 0
    %1234 = vmatprep.subr.bf16.mxu0 0
    %1235 = vmatpush1.bf16.msra.mxu0 0
    %1236 = vmatprep.subr.bf16.mxu0 0
    %1237 = vmatpush1.bf16.msra.mxu0 0
    %1238 = vmatprep.subr.bf16.mxu0 0
    %1239 = vmatpush1.bf16.msra.mxu0 0
    %1240 = vmatprep.subr.bf16.mxu0 0
    %1241 = vmatpush1.bf16.msra.mxu0 0
    %1242 = vmatprep.subr.bf16.mxu0 0
    %1243 = vmatpush1.bf16.msra.mxu0 0
    %1244 = vmatprep.subr.bf16.mxu0 0
    %1245 = vmatpush1.bf16.msra.mxu0 0
    %1246 = vmatprep.subr.bf16.mxu0 0
    %1247 = vmatpush1.bf16.msra.mxu0 %v979
    %1248 = vmatprep.subr.bf16.mxu0 0
    %1249 = vmatpush2.bf16.msra.mxu0 0
    %1250 = vmatprep.subr.bf16.mxu0 0
    %1251 = vmatpush2.bf16.msra.mxu0 0
    %1252 = vmatprep.subr.bf16.mxu0 0
    %1253 = vmatpush2.bf16.msra.mxu0 0
    %1254 = vmatprep.subr.bf16.mxu0 0
    %1255 = vmatpush2.bf16.msra.mxu0 0
    %1256 = vmatprep.subr.bf16.mxu0 0
    %1257 = vmatpush2.bf16.msra.mxu0 0
    %1258 = vmatprep.subr.bf16.mxu0 0
    %1259 = vmatpush2.bf16.msra.mxu0 0
    %1260 = vmatprep.subr.bf16.mxu0 0
    %1261 = vmatpush2.bf16.msra.mxu0 0
    %1262 = vmatprep.subr.bf16.mxu0 0
    %1263 = vmatpush2.bf16.msra.mxu0 0
    %1264 = vmatprep.mubr.bf16.mxu0 0
    %1265 = vmatmul.mubr.bf16.gmra.mxu0 %v1183
    %v1266 = vpop.f32.mrf.mxu0
    %v1267 = vadd.f32 0.0, %v1266
    %v1268 = vpop.f32.mrf.mxu0
    %v1269 = vpop.f32.mrf.mxu0
    %v1270 = vpop.f32.mrf.mxu0
    %1271 = vdwg.mxu0
    %v1272 = vmul.f32 %v1267, %v1180
    %v1273 = vsel %vm88, %v1272, 0.0
    %1274 = vadd.xlane.f32.xlu0 %v1273
    %v1275 = vpop.xlane.xlu0 %1274
    %v1276 = vrot.slane %v1275, 4
    %v1277 = vadd.f32 %v1275, %v1276
    %v1278 = vrot.slane %v1277, 2
    %v1279 = vadd.f32 %v1277, %v1278
    %v1280 = vrot.slane %v1279, 1
    %v1281 = vadd.f32 %v1279, %v1280
    %v1282 = vsel %vm88, %v1267, 0.0
    %1283 = vadd.xlane.f32.xlu0 %v1282
    %v1284 = vpop.xlane.xlu0 %1283
    %v1285 = vadd.f32 %v1035, 0.0
    %v1286 = vadd.f32 %v1038, 0.0
    %v1287 = vsel %vm828, %v1285, 0.0
    %v1288 = vsel %vm828, %v1286, 0.0
    %v1289 = vadd.f32 %v1287, %v1288
    %v1290 = vrot.slane %v1289, 4
    %v1291 = vadd.f32 %v1289, %v1290
    %v1292 = vrot.slane %v1291, 2
    %v1293 = vadd.f32 %v1291, %v1292
    %v1294 = vrot.slane %v1293, 1
    %v1295 = vadd.f32 %v1293, %v1294
    %v1296 = vsub.f32 %v1295, 16.0
    %v1297 = vmax.f32 %v1296, 1e-12
    %v1298 = vmul.f32 %v1284, %v1284
    %v1299 = vadd.f32 %v1298, 0.0
    %v1300 = vrot.slane %v1299, 4
    %v1301 = vadd.f32 %v1299, %v1300
    %v1302 = vrot.slane %v1301, 2
    %v1303 = vadd.f32 %v1301, %v1302
    %v1304 = vrot.slane %v1303, 1
    %v1305 = vadd.f32 %v1303, %v1304
    %v1306 = vrcp.pop %v1297
    %v1307 = vmul.f32 %v1305, %v1306
    %v1308 = vsub.f32 %v1281, %v1307
    %v1309 = vsub.f32 0.0, %v1308
    %v1310 = vmul.f32 %v1309, %v1306
    %1311 = vmatprep.subr.bf16.mxu0 0
    %1312 = vmatpush1.bf16.xpose.msra.mxu0 0
    %1313 = vmatprep.subr.bf16.mxu0 0
    %1314 = vmatpush1.bf16.xpose.msra.mxu0 0
    %1315 = vmatprep.subr.bf16.mxu0 0
    %1316 = vmatpush1.bf16.xpose.msra.mxu0 0
    %1317 = vmatprep.subr.bf16.mxu0 0
    %1318 = vmatpush1.bf16.xpose.msra.mxu0 0
    %1319 = vmatprep.subr.bf16.mxu0 0
    %1320 = vmatpush1.bf16.xpose.msra.mxu0 0
    %1321 = vmatprep.subr.bf16.mxu0 0
    %1322 = vmatpush1.bf16.xpose.msra.mxu0 0
    %1323 = vmatprep.subr.bf16.mxu0 0
    %1324 = vmatpush1.bf16.xpose.msra.mxu0 0
    %1325 = vmatprep.subr.bf16.mxu0 0
    %1326 = vmatpush1.bf16.xpose.msra.mxu0 %v1183
    %1327 = vmatprep.subr.bf16.mxu0 0
    %1328 = vmatpush2.bf16.xpose.msra.mxu0 0
    %1329 = vmatprep.subr.bf16.mxu0 0
    %1330 = vmatpush2.bf16.xpose.msra.mxu0 0
    %1331 = vmatprep.subr.bf16.mxu0 0
    %1332 = vmatpush2.bf16.xpose.msra.mxu0 0
    %1333 = vmatprep.subr.bf16.mxu0 0
    %1334 = vmatpush2.bf16.xpose.msra.mxu0 0
    %1335 = vmatprep.subr.bf16.mxu0 0
    %1336 = vmatpush2.bf16.xpose.msra.mxu0 0
    %1337 = vmatprep.subr.bf16.mxu0 0
    %1338 = vmatpush2.bf16.xpose.msra.mxu0 0
    %1339 = vmatprep.subr.bf16.mxu0 0
    %1340 = vmatpush2.bf16.xpose.msra.mxu0 0
    %1341 = vmatprep.subr.bf16.mxu0 0
    %1342 = vmatpush2.bf16.xpose.msra.mxu0 0
    %1343 = vmatprep.mubr.bf16.mxu0 0
    %1344 = vmatmul.mubr.bf16.gmra.mxu0 %v1183
    %v1345 = vpop.f32.mrf.mxu0
    %v1346 = vadd.f32 0.0, %v1345
    %v1347 = vpop.f32.mrf.mxu0
    %v1348 = vpop.f32.mrf.mxu0
    %v1349 = vpop.f32.mrf.mxu0
    %1350 = vdwg.mxu0
    %v1351 = vmul.f32 %v1346, %v1346
    %v1352 = vsel %vm894, %v1351, 0.0
    %1353 = vadd.xlane.f32.xlu0 %v1352
    %v1354 = vpop.xlane.xlu0 %1353
    %v1355 = vrot.slane %v1354, 4
    %v1356 = vadd.f32 %v1354, %v1355
    %v1357 = vrot.slane %v1356, 2
    %v1358 = vadd.f32 %v1356, %v1357
    %v1359 = vrot.slane %v1358, 1
    %v1360 = vadd.f32 %v1358, %v1359
    %v1361 = vrsqrt.pop %v1360
    %v1362 = vmul.f32 %v1360, %v1361
    %vm1363 = vcmp.eq.f32.partialorder %v1360, inf
    %v1364 = vsel %vm1363, %v1360, %v1362
    %vm1365 = vcmp.eq.f32.partialorder %v1360, 0.0
    %v1366 = vand.u32 %v1360, 2147483648
    %v1367 = vsel %vm1365, %v1366, %v1364
    %v1368 = vmax.f32 %v1367, 1e-12
    %v1369 = vmul.f32 %v1180, %v1180
    %v1370 = vsel %vm88, %v1369, 0.0
    %1371 = vadd.xlane.f32.xlu0 %v1370
    %v1372 = vpop.xlane.xlu0 %1371
    %v1373 = vrot.slane %v1372, 4
    %v1374 = vadd.f32 %v1372, %v1373
    %v1375 = vrot.slane %v1374, 2
    %v1376 = vadd.f32 %v1374, %v1375
    %v1377 = vrot.slane %v1376, 1
    %v1378 = vadd.f32 %v1376, %v1377
    %v1379 = vmul.f32 %v1378, 2.0
    %v1380 = vmul.f32 %v1379, 0.35355338
    %v1381 = vrcp.pop %v1368
    %v1382 = vmul.f32 %v1380, %v1381
    %v1383 = vsub.f32 2.0, %v1382
    %v1384 = vmax.f32 %v1383, 0.0
    %v1385 = vrsqrt.pop %v1384
    %v1386 = vmul.f32 %v1384, %v1385
    %vm1387 = vcmp.eq.f32.partialorder %v1384, inf
    %v1388 = vsel %vm1387, %v1384, %v1386
    %vm1389 = vcmp.eq.f32.partialorder %v1384, 0.0
    %v1390 = vand.u32 %v1384, 2147483648
    %v1391 = vsel %vm1389, %v1390, %v1388
    %v1392 = vsel %vm88, %v1180, 0.0
    %1393 = vadd.xlane.f32.xlu0 %v1392
    %v1394 = vpop.xlane.xlu0 %1393
    %v1395 = vmul.f32 %v1394, %v1394
    %v1396 = vadd.f32 %v1395, 0.0
    %v1397 = vrot.slane %v1396, 4
    %v1398 = vadd.f32 %v1396, %v1397
    %v1399 = vrot.slane %v1398, 2
    %v1400 = vadd.f32 %v1398, %v1399
    %v1401 = vrot.slane %v1400, 1
    %v1402 = vadd.f32 %v1400, %v1401
    %v1403 = vrsqrt.pop %v1402
    %v1404 = vmul.f32 %v1402, %v1403
    %vm1405 = vcmp.eq.f32.partialorder %v1402, inf
    %v1406 = vsel %vm1405, %v1402, %v1404
    %vm1407 = vcmp.eq.f32.partialorder %v1402, 0.0
    %v1408 = vand.u32 %v1402, 2147483648
    %v1409 = vsel %vm1407, %v1408, %v1406
    %1410 = vmax.xlane.f32.xlu0 %v1231
    %v1411 = vpop.xlane.xlu0 %1410
    %v1412 = vsub.f32 %v1231, %v1411
    %v1413 = vmul.f32 %v1412, 1.442695
    %v1414 = vpow.pop %v1413
    %1415 = vadd.xlane.f32.xlu0 %v1414
    %v1416 = vpop.xlane.xlu0 %1415
    %v1417 = vlog2.pop %v1416
    %v1418 = vmul.f32 %v1417, 0.6931472
    %v1419 = vsub.f32 %v1412, %v1418
    %s1420 = scalar_lea.vmem [#allocation7], 8
    %1421 = vst [vmem:[%s1420] sm:$0xff] %v1419
    %s1422 = scalar_lea.vmem [#allocation8], 8
    %1423 = vst.msk [vmem:[%s1422] sm:$0xff] %vm88, %v1180
    %v1424 = vsel %vm828, %v1310, %v1391
    %v1425 = vsel %vm966, %v1424, %v1409
    %v1426 = vsel %vm968, %v1425, %v82
    %s1427 = scalar_lea.vmem [#allocation10], 1
    %1428 = vst.msk [vmem:[%s1427] sm:$0x1] %vm970, %v1426
    // Predicated region
    $region50: #{tpu_custom_call.1} parent=1 // pred_check
      _
    $region51: #{tpu_custom_call.1} parent=1 // pred_check_branch
      %1430 = sbr.rel (0) target = $region53
    $region52: #{tpu_custom_call.1} parent=1 // pred_region
      %s1432 = ssub.s32 256, 256
      %1433 = vsyncadd [#allocation4], %s1432
      %s1434 = sshll.u32 [#allocation7], 4
      %s1435 = int_to_ptr.vmem [resolvable:$true] %s1434
      %1440 = dma.vmem_to_hbm [thread:$0]  %s1435, 256, %s10, [#allocation4], 128, 128, 8
    $region53: #{tpu_custom_call.1} parent=1 // pred_fallthru
      _
    // Predicated region
    $region54: #{tpu_custom_call.1} parent=1 // pred_check
      _
    $region55: #{tpu_custom_call.1} parent=1 // pred_check_branch
      %1442 = sbr.rel (0) target = $region57
    $region56: #{tpu_custom_call.1} parent=1 // pred_region
      %s1444 = ssub.s32 256, 256
      %1445 = vsyncadd [#allocation9], %s1444
      %s1446 = sshll.u32 [#allocation8], 4
      %s1447 = int_to_ptr.vmem [resolvable:$true] %s1446
      %1452 = dma.vmem_to_hbm [thread:$0]  %s1447, 256, %s11, [#allocation9], 128, 128, 8
    $region57: #{tpu_custom_call.1} parent=1 // pred_fallthru
      _
    // Predicated region
    $region58: #{tpu_custom_call.1} parent=1 // pred_check
      _
    $region59: #{tpu_custom_call.1} parent=1 // pred_check_branch
      %1454 = sbr.rel (0) target = $region61
    $region60: #{tpu_custom_call.1} parent=1 // pred_region
      %s1456 = ssub.s32 32, 32
      %1457 = vsyncadd [#allocation9], %s1456
      %s1458 = sshll.u32 [#allocation10], 4
      %s1459 = int_to_ptr.vmem [resolvable:$true] %s1458
      %1464 = dma.vmem_to_hbm [thread:$0]  %s1459, 32, %s12, [#allocation9], 16, 16, 1
    $region61: #{tpu_custom_call.1} parent=1 // pred_fallthru
      _
    // Predicated region
    $region62: #{tpu_custom_call.1} parent=1 // pred_check
      _
    $region63: #{tpu_custom_call.1} parent=1 // pred_check_branch
      %1466 = sbr.rel (0) target = $region65
    $region64: #{tpu_custom_call.1} parent=1 // pred_region
      %1467 = dma.done [#allocation4], 256
    $region65: #{tpu_custom_call.1} parent=1 // pred_fallthru
      _
    // Predicated region
    $region66: #{tpu_custom_call.1} parent=1 // pred_check
      _
    $region67: #{tpu_custom_call.1} parent=1 // pred_check_branch
      %1469 = sbr.rel (0) target = $region69
    $region68: #{tpu_custom_call.1} parent=1 // pred_region
      %1470 = dma.done [#allocation9], 256
    $region69: #{tpu_custom_call.1} parent=1 // pred_fallthru
      _
    // Predicated region
    $region70: #{tpu_custom_call.1} parent=1 // pred_check
      _
    $region71: #{tpu_custom_call.1} parent=1 // pred_check_branch
      %1472 = sbr.rel (0) target = $region73
    $region72: #{tpu_custom_call.1} parent=1 // pred_region
      %1473 = dma.done [#allocation9], 32
    $region73: #{tpu_custom_call.1} parent=1 // pred_fallthru
      _
    %1474 = vsyncpa [#allocation3], 1
    %1475 = vsyncpa [#allocation6], 1
    %1476 = vsyncpa [#allocation4], 1
    %1477 = vsyncpa [#allocation9], 1

</llo_original>
